<compile_context>
chip_gen: v6e
topology: v6e:2x2x1
jax: 0.10.0
libtpu: 0.0.40
codegen_flags: <defaults>
</compile_context>

<pallas_src>
import functools
import math

import jax
import jax.numpy as jnp
from jax import lax
from jax.experimental import pallas as pl
from jax.experimental.pallas import tpu as pltpu


SUB_R = 64           # rows per inner-loop step (bounds vreg live ranges)
MAX_BLOCK_R = 256    # rows per grid step (>= ~1 MiB of input per step)


def _cdiv(a, b):
    return -(-a // b)


def _bucket_tiles(t):
    """Smallest value >= t of the form m * 2**k with m in {4..7} (t itself if
    t <= 7): padding waste <= 25% while keeping few distinct compiled shapes."""
    if t <= 7:
        return t
    k = 0
    while t > 7:
        t = -(-t // 2)
        k += 1
    return t << k


def _recip(x):
    """EUP approximate reciprocal + one Newton step (~f32 precision).

    Moves divide work off the VALU slot (the binding slot on v6e/v7x) onto the
    otherwise-idle EUP slot; the Newton refinement is 3 cheap VALU ops.
    """
    r = pl.reciprocal(x, approx=True)
    return r * (2.0 - x * r)


def _atan_f32(x):
    """float32 arctan (Cephes range reduction + minimax poly).

    The two range-reduction divides are fused into a single
    select-numerator / select-denominator reciprocal-multiply.
    """
    sign = jnp.where(x < 0.0, jnp.float32(-1.0), jnp.float32(1.0))
    ax = jnp.abs(x)
    tan3pi8 = jnp.float32(2.414213562373095)    # tan(3*pi/8)
    tanpi8 = jnp.float32(0.4142135623730950)    # tan(pi/8)
    big = ax > tan3pi8
    mid = jnp.logical_and(jnp.logical_not(big), ax > tanpi8)

    num_r = jnp.where(big, jnp.float32(-1.0), jnp.where(mid, ax - 1.0, ax))
    den_r = jnp.where(big, ax, jnp.where(mid, ax + 1.0, jnp.float32(1.0)))
    xr = num_r * _recip(den_r)

    base = jnp.where(big, jnp.float32(math.pi / 2),
                     jnp.where(mid, jnp.float32(math.pi / 4), jnp.float32(0.0)))
    z = xr * xr
    poly = ((jnp.float32(8.05374449538e-2) * z - jnp.float32(1.38776856032e-1)) * z
            + jnp.float32(1.99777106478e-1)) * z - jnp.float32(3.33329491539e-1)
    return sign * (base + poly * z * xr + xr)


def _comb_subblock(pred_ref, tgt_ref, row0, eps, alpha):
    """alpha*DIoU + (1-alpha)*CIoU per box for one (SUB_R, 128) sub-block."""
    sl = pl.ds(row0, SUB_R)
    b1_x1 = pred_ref[0, sl, :]
    b1_y1 = pred_ref[1, sl, :]
    b1_x2 = pred_ref[2, sl, :]
    b1_y2 = pred_ref[3, sl, :]
    b2_x1 = tgt_ref[0, sl, :]
    b2_y1 = tgt_ref[1, sl, :]
    b2_x2 = tgt_ref[2, sl, :]
    b2_y2 = tgt_ref[3, sl, :]

    eps = jnp.float32(eps)

    w1 = b1_x2 - b1_x1
    hh1 = b1_y2 - b1_y1
    w2 = b2_x2 - b2_x1
    hh2 = b2_y2 - b2_y1

    # ---- IoU (single exact divide kept here: it feeds both DIoU and the CIoU
    # denominator, per the numerical-safety note in the review) ----
    iw = jnp.maximum(jnp.minimum(b1_x2, b2_x2) - jnp.maximum(b1_x1, b2_x1), 0.0)
    ih = jnp.maximum(jnp.minimum(b1_y2, b2_y2) - jnp.maximum(b1_y1, b2_y1), 0.0)
    overlap = iw * ih
    union = w1 * hh1 + w2 * hh2 - overlap + eps
    ious = overlap / union
    one_minus_iou = 1.0 - ious

    # ---- enclosing-box diagonal ----
    cw = jnp.maximum(jnp.maximum(b1_x2, b2_x2) - jnp.minimum(b1_x1, b2_x1), 0.0)
    ch = jnp.maximum(jnp.maximum(b1_y2, b2_y2) - jnp.minimum(b1_y1, b2_y1), 0.0)
    c2 = cw * cw + ch * ch + eps

    # ---- center-distance term (shared by DIoU & CIoU) ----
    dx = b2_x1 + b2_x2 - (b1_x1 + b1_x2)
    dy = b2_y1 + b2_y2 - (b1_y1 + b1_y2)
    rho2_over_c2 = (0.25 * (dx * dx + dy * dy)) * _recip(c2)

    # ---- aspect-ratio term: one atan via atan(a)-atan(b)=atan((a-b)/(1+ab)) ----
    h1 = hh1 + eps
    h2 = hh2 + eps
    hh = h1 * h2
    num = w2 * h1 - w1 * h2
    den = hh + w1 * w2
    datan = _atan_f32(num * _recip(den))
    # branch-cut correction, only relevant for degenerate boxes (1 + a*b < 0)
    corr = jnp.where(den * hh < 0.0,
                     jnp.where(w2 * h2 > 0.0, jnp.float32(math.pi),
                               jnp.float32(-math.pi)),
                     jnp.float32(0.0))
    datan = datan + corr
    v = jnp.float32(4.0 / (math.pi ** 2)) * datan * datan

    # alpha*diou + (1-alpha)*ciou = (1 - iou + rho2/c2) + (1-alpha)*v^2/(1-iou+v)
    return (one_minus_iou + rho2_over_c2
            + jnp.float32(1.0 - alpha) * (v * v) * _recip(one_minus_iou + v))


def _combined_iou_kernel(n_ref, pred_ref, tgt_ref, out_ref, *,
                         eps, alpha, block_rows):
    # n_ref:   (1,) int32 SMEM (scalar prefetch)
    # pred_ref/tgt_ref: (4, block_rows, 128) VMEM channel planes
    # out_ref: (1, SUB_R, 128) VMEM per-chunk partial-sum accumulator
    i = pl.program_id(1)
    tiles_per_chunk = pl.num_programs(1)
    tile_idx = pl.program_id(0) * tiles_per_chunk + i

    @pl.when(i == 0)
    def _():
        out_ref[...] = jnp.zeros_like(out_ref)

    n = n_ref[0]
    tile_elems = block_rows * 128
    tile_start = tile_idx * tile_elems
    tile_full = (tile_start + tile_elems) <= n
    tile_any = tile_start < n
    n_inner = block_rows // SUB_R

    def accumulate(masked):
        def body(r, carry):
            row0 = pl.multiple_of(r * SUB_R, SUB_R)
            comb = _comb_subblock(pred_ref, tgt_ref, row0, eps, alpha)
            if masked:
                rows_i = lax.broadcasted_iota(jnp.int32, comb.shape, 0)
                lanes = lax.broadcasted_iota(jnp.int32, comb.shape, 1)
                flat = tile_start + (row0 + rows_i) * 128 + lanes
                comb = jnp.where(flat < n, comb, 0.0)
            out_ref[0] = out_ref[0] + comb
            return carry
        lax.fori_loop(0, n_inner, body, 0)

    # Fully-valid tiles accumulate unmasked; boundary tiles pay the iota mask;
    # fully-padded tiles skip all compute (only the DMA of zeros happens).
    @pl.when(tile_full)
    def _():
        accumulate(False)

    @pl.when(jnp.logical_and(tile_any, jnp.logical_not(tile_full)))
    def _():
        accumulate(True)


def _to_planes(x, n_pad):
    """(n, 4) boxes -> channel planes (4, n_pad//128, 128) f32."""
    x = x.astype(jnp.float32)
    n = x.shape[0]
    x = jnp.pad(x, ((0, n_pad - n), (0, 0)))           # (n_pad, 4)
    return x.T.reshape(4, n_pad // 128, 128)            # (4, r_pad, 128)


def combined_iou_loss(pred, target, *, eps=1e-6, loss_weight=1.0, alpha=0.5):
    """CombinedIoULoss.forward(pred, target) with weight=None, reduction='mean'.

    pred, target: (n, 4) boxes in (x1, y1, x2, y2).
    """
    assert pred.shape == target.shape and pred.shape[-1] == 4
    n = int(pred.shape[0])
    if n == 0:
        # torch's mean over an empty tensor is NaN.
        return jnp.float32(float("nan"))

    num_chunks = 2   # feeds both TensorCores on v7x; harmless sequential on v5e/v6e
    rows = _cdiv(n, 128)
    if rows <= num_chunks * MAX_BLOCK_R:
        # Small/medium n: one tile per chunk, sized to just cover the rows
        # (block_rows in {64,128,192,256} -> bounded recompile variety).
        block_rows = SUB_R * _cdiv(_cdiv(rows, num_chunks), SUB_R)
        tiles_per_chunk = 1
    else:
        block_rows = MAX_BLOCK_R
        t = _bucket_tiles(_cdiv(rows, block_rows))
        if t % 2:
            t += 1                                  # even split across chunks
        tiles_per_chunk = t // 2
    r_pad = num_chunks * tiles_per_chunk * block_rows
    n_pad = r_pad * 128

    # pred and target are relaid out separately (no concatenate -> one fewer
    # full HBM pass); pad + transpose should fuse into a single copy in XLA.
    pred_planes = _to_planes(pred, n_pad)
    tgt_planes = _to_planes(target, n_pad)

    n_arr = jnp.array([n], jnp.int32)

    kernel = functools.partial(_combined_iou_kernel, eps=float(eps),
                               alpha=float(alpha), block_rows=block_rows)

    box_spec = pl.BlockSpec(
        (4, block_rows, 128),
        lambda c, i, n_s, _tpc=tiles_per_chunk: (0, c * _tpc + i, 0))

    partials = pl.pallas_call(
        kernel,
        out_shape=jax.ShapeDtypeStruct((num_chunks, SUB_R, 128), jnp.float32),
        grid_spec=pltpu.PrefetchScalarGridSpec(
            num_scalar_prefetch=1,
            grid=(num_chunks, tiles_per_chunk),
            in_specs=[box_spec, box_spec],
            out_specs=pl.BlockSpec((1, SUB_R, 128),
                                   lambda c, i, n_s: (c, 0, 0)),
        ),
        compiler_params=pltpu.CompilerParams(
            dimension_semantics=("parallel", "arbitrary")),
    )(n_arr, pred_planes, tgt_planes)

    # tiny cross-lane reduction + mean + loss_weight outside the kernel
    return jnp.sum(partials) * jnp.float32(float(loss_weight) / n)


# ---------------------------------------------------------------------------
# Pure-JAX reference (direct transcription of the PyTorch module) for checking.
# ---------------------------------------------------------------------------
def _diou_loss_ref(pred, target, eps):
    lt = jnp.maximum(pred[:, :2], target[:, :2])
    rb = jnp.minimum(pred[:, 2:], target[:, 2:])
    wh = jnp.maximum(rb - lt, 0.0)
    overlap = wh[:, 0] * wh[:, 1]
    ap = (pred[:, 2] - pred[:, 0]) * (pred[:, 3] - pred[:, 1])
    ag = (target[:, 2] - target[:, 0]) * (target[:, 3] - target[:, 1])
    union = ap + ag - overlap + eps
    ious = overlap / union
    ex1y1 = jnp.minimum(pred[:, :2], target[:, :2])
    ex2y2 = jnp.maximum(pred[:, 2:], target[:, 2:])
    ewh = jnp.maximum(ex2y2 - ex1y1, 0.0)
    c2 = ewh[:, 0] ** 2 + ewh[:, 1] ** 2 + eps
    left = (target[:, 0] + target[:, 2] - (pred[:, 0] + pred[:, 2])) ** 2 / 4
    right = (target[:, 1] + target[:, 3] - (pred[:, 1] + pred[:, 3])) ** 2 / 4
    rho2 = left + right
    return 1.0 - (ious - rho2 / c2)


def _ciou_loss_ref(pred, target, eps):
    lt = jnp.maximum(pred[:, :2], target[:, :2])
    rb = jnp.minimum(pred[:, 2:], target[:, 2:])
    wh = jnp.maximum(rb - lt, 0.0)
    overlap = wh[:, 0] * wh[:, 1]
    ap = (pred[:, 2] - pred[:, 0]) * (pred[:, 3] - pred[:, 1])
    ag = (target[:, 2] - target[:, 0]) * (target[:, 3] - target[:, 1])
    union = ap + ag - overlap + eps
    ious = overlap / union
    ex1y1 = jnp.minimum(pred[:, :2], target[:, :2])
    ex2y2 = jnp.maximum(pred[:, 2:], target[:, 2:])
    ewh = jnp.maximum(ex2y2 - ex1y1, 0.0)
    c2 = ewh[:, 0] ** 2 + ewh[:, 1] ** 2 + eps
    w1 = pred[:, 2] - pred[:, 0]
    h1 = pred[:, 3] - pred[:, 1] + eps
    w2 = target[:, 2] - target[:, 0]
    h2 = target[:, 3] - target[:, 1] + eps
    left = (target[:, 0] + target[:, 2] - (pred[:, 0] + pred[:, 2])) ** 2 / 4
    right = (target[:, 1] + target[:, 3] - (pred[:, 1] + pred[:, 3])) ** 2 / 4
    rho2 = left + right
    factor = 4 / math.pi ** 2
    v = factor * (jnp.arctan(w2 / h2) - jnp.arctan(w1 / h1)) ** 2
    cious = ious - (rho2 / c2 + v ** 2 / (1 - ious + v))
    return 1.0 - cious


def combined_iou_loss_ref(pred, target, *, eps=1e-6, loss_weight=1.0, alpha=0.5):
    ld = jnp.mean(_diou_loss_ref(pred, target, eps))
    lc = jnp.mean(_ciou_loss_ref(pred, target, eps))
    return loss_weight * (alpha * ld + (1.0 - alpha) * lc)


def _make_boxes(key, n):
    k1, k2, k3, k4 = jax.random.split(key, 4)
    p_xy = jax.random.uniform(k1, (n, 2), jnp.float32) * 10.0
    p_wh = jax.random.uniform(k2, (n, 2), jnp.float32) * 5.0 + 0.1
    pred = jnp.concatenate([p_xy, p_xy + p_wh], axis=-1)
    t_xy = jax.random.uniform(k3, (n, 2), jnp.float32) * 10.0
    t_wh = jax.random.uniform(k4, (n, 2), jnp.float32) * 5.0 + 0.1
    target = jnp.concatenate([t_xy, t_xy + t_wh], axis=-1)
    return pred, target


if __name__ == "__main__":
    key = jax.random.PRNGKey(0)

    # n = 77:    one 64-row tile per chunk, masked boundary + skipped padding tile.
    # n = 20000: 128-row tiles, one fully-valid chunk + one masked boundary chunk.
    # n = 70000: 256-row tiles, tiles_per_chunk=2 -> in-chunk accumulation,
    #            unmasked / masked / fully-skipped tiles all exercised.
    cases = [
        (77, dict(eps=1e-6, loss_weight=1.0, alpha=0.5)),
        (77, dict(eps=1e-6, loss_weight=2.0, alpha=0.3)),
        (20000, dict(eps=1e-6, loss_weight=1.0, alpha=0.5)),
        (70000, dict(eps=1e-6, loss_weight=1.5, alpha=0.7)),
    ]
    for n, kw in cases:
        key, sub = jax.random.split(key)
        pred, target = _make_boxes(sub, n)
        loss = combined_iou_loss(pred, target, **kw)
        jax.block_until_ready(loss)
        ref = combined_iou_loss_ref(pred, target, **kw)
        assert jnp.allclose(loss, ref, rtol=1e-4, atol=1e-5), (n, kw, loss, ref)

    print("KERNEL_OK")
</pallas_src>

<mosaic_0001>
module attributes {stable_mosaic.version = 11 : i64} {
  func.func @_combined_iou_kernel(%arg0: i32, %arg1: i32, %arg2: memref<1xi32, #tpu.memory_space<smem>>, %arg3: memref<4x64x128xf32, #tpu.memory_space<vmem>>, %arg4: memref<4x64x128xf32, #tpu.memory_space<vmem>>, %arg5: memref<1x64x128xf32, #tpu.memory_space<vmem>>) attributes {dimension_semantics = [#tpu.dimension_semantics<parallel>, #tpu.dimension_semantics<arbitrary>], iteration_bounds = array<i64: 2, 1>, scalar_prefetch = 1 : i64, scratch_operands = 0 : i64, tpu.core_type = #tpu.core_type<tc>, window_params = [{transform_indices = @transform_0, window_bounds = array<i64: 4, 64, 128>}, {transform_indices = @transform_1, window_bounds = array<i64: 4, 64, 128>}, {transform_indices = @transform_2, window_bounds = array<i64: 1, 64, 128>}]} {
    %c1_i32 = arith.constant 1 : i32
    %0 = arith.muli %arg0, %c1_i32 : i32
    %1 = arith.addi %0, %arg1 : i32
    %c0_i32 = arith.constant 0 : i32
    %2 = arith.cmpi eq, %arg1, %c0_i32 : i32
    %3 = arith.extui %2 : i1 to i32
    %c0_i32_0 = arith.constant 0 : i32
    %4 = arith.cmpi ne, %3, %c0_i32_0 : i32
    scf.if %4 {
      %cst = arith.constant 0.000000e+00 : f32
      %16 = vector.broadcast %cst : f32 to vector<1x64x128xf32>
      %c0_4 = arith.constant 0 : index
      %c0_5 = arith.constant 0 : index
      %c0_6 = arith.constant 0 : index
      %17 = vector.load %arg5[%c0_4, %c0_5, %c0_6] : memref<1x64x128xf32, #tpu.memory_space<vmem>>, vector<1x64x128xf32>
      tpu.vector_store %arg5[%c0_4, %c0_5, %c0_6], %16 {strides = array<i32>} : memref<1x64x128xf32, #tpu.memory_space<vmem>>, vector<1x64x128xf32>,
    } else {
    }
    %c0 = arith.constant 0 : index
    %5 = memref.load %arg2[%c0] : memref<1xi32, #tpu.memory_space<smem>>
    %c8192_i32 = arith.constant 8192 : i32
    %6 = arith.muli %1, %c8192_i32 : i32
    %c8192_i32_1 = arith.constant 8192 : i32
    %7 = arith.addi %6, %c8192_i32_1 : i32
    %8 = arith.cmpi sle, %7, %5 : i32
    %9 = arith.cmpi slt, %6, %5 : i32
    %10 = arith.extui %8 : i1 to i32
    %c0_i32_2 = arith.constant 0 : i32
    %11 = arith.cmpi ne, %10, %c0_i32_2 : i32
    scf.if %11 {
      %c0_i32_4 = arith.constant 0 : i32
      %c64_i32 = arith.constant 64 : i32
      %16 = arith.muli %c0_i32_4, %c64_i32 : i32
      %17 = tpu.assume_multiple %16, 64 : i32
      %c0_5 = arith.constant 0 : index
      %18 = arith.index_cast %17 : i32 to index
      %c0_6 = arith.constant 0 : index
      %19 = vector.load %arg3[%c0_5, %18, %c0_6] : memref<4x64x128xf32, #tpu.memory_space<vmem>>, vector<1x64x128xf32>
      %20 = vector.shape_cast %19 : vector<1x64x128xf32> to vector<64x128xf32>
      %c1 = arith.constant 1 : index
      %21 = arith.index_cast %17 : i32 to index
      %c0_7 = arith.constant 0 : index
      %22 = vector.load %arg3[%c1, %21, %c0_7] : memref<4x64x128xf32, #tpu.memory_space<vmem>>, vector<1x64x128xf32>
      %23 = vector.shape_cast %22 : vector<1x64x128xf32> to vector<64x128xf32>
      %c2 = arith.constant 2 : index
      %24 = arith.index_cast %17 : i32 to index
      %c0_8 = arith.constant 0 : index
      %25 = vector.load %arg3[%c2, %24, %c0_8] : memref<4x64x128xf32, #tpu.memory_space<vmem>>, vector<1x64x128xf32>
      %26 = vector.shape_cast %25 : vector<1x64x128xf32> to vector<64x128xf32>
      %c3 = arith.constant 3 : index
      %27 = arith.index_cast %17 : i32 to index
      %c0_9 = arith.constant 0 : index
      %28 = vector.load %arg3[%c3, %27, %c0_9] : memref<4x64x128xf32, #tpu.memory_space<vmem>>, vector<1x64x128xf32>
      %29 = vector.shape_cast %28 : vector<1x64x128xf32> to vector<64x128xf32>
      %c0_10 = arith.constant 0 : index
      %30 = arith.index_cast %17 : i32 to index
      %c0_11 = arith.constant 0 : index
      %31 = vector.load %arg4[%c0_10, %30, %c0_11] : memref<4x64x128xf32, #tpu.memory_space<vmem>>, vector<1x64x128xf32>
      %32 = vector.shape_cast %31 : vector<1x64x128xf32> to vector<64x128xf32>
      %c1_12 = arith.constant 1 : index
      %33 = arith.index_cast %17 : i32 to index
      %c0_13 = arith.constant 0 : index
      %34 = vector.load %arg4[%c1_12, %33, %c0_13] : memref<4x64x128xf32, #tpu.memory_space<vmem>>, vector<1x64x128xf32>
      %35 = vector.shape_cast %34 : vector<1x64x128xf32> to vector<64x128xf32>
      %c2_14 = arith.constant 2 : index
      %36 = arith.index_cast %17 : i32 to index
      %c0_15 = arith.constant 0 : index
      %37 = vector.load %arg4[%c2_14, %36, %c0_15] : memref<4x64x128xf32, #tpu.memory_space<vmem>>, vector<1x64x128xf32>
      %38 = vector.shape_cast %37 : vector<1x64x128xf32> to vector<64x128xf32>
      %c3_16 = arith.constant 3 : index
      %39 = arith.index_cast %17 : i32 to index
      %c0_17 = arith.constant 0 : index
      %40 = vector.load %arg4[%c3_16, %39, %c0_17] : memref<4x64x128xf32, #tpu.memory_space<vmem>>, vector<1x64x128xf32>
      %41 = vector.shape_cast %40 : vector<1x64x128xf32> to vector<64x128xf32>
      %42 = arith.subf %26, %20 : vector<64x128xf32>
      %43 = arith.subf %29, %23 : vector<64x128xf32>
      %44 = arith.subf %38, %32 : vector<64x128xf32>
      %45 = arith.subf %41, %35 : vector<64x128xf32>
      %46 = arith.minimumf %26, %38 : vector<64x128xf32>
      %47 = arith.maximumf %20, %32 : vector<64x128xf32>
      %48 = arith.subf %46, %47 : vector<64x128xf32>
      %cst = arith.constant 0.000000e+00 : f32
      %49 = vector.broadcast %cst : f32 to vector<64x128xf32>
      %50 = arith.maximumf %48, %49 : vector<64x128xf32>
      %51 = arith.minimumf %29, %41 : vector<64x128xf32>
      %52 = arith.maximumf %23, %35 : vector<64x128xf32>
      %53 = arith.subf %51, %52 : vector<64x128xf32>
      %cst_18 = arith.constant 0.000000e+00 : f32
      %54 = vector.broadcast %cst_18 : f32 to vector<64x128xf32>
      %55 = arith.maximumf %53, %54 : vector<64x128xf32>
      %56 = arith.mulf %50, %55 : vector<64x128xf32>
      %57 = arith.mulf %42, %43 : vector<64x128xf32>
      %58 = arith.mulf %44, %45 : vector<64x128xf32>
      %59 = arith.addf %57, %58 : vector<64x128xf32>
      %60 = arith.subf %59, %56 : vector<64x128xf32>
      %cst_19 = arith.constant 9.99999997E-7 : f32
      %61 = vector.broadcast %cst_19 : f32 to vector<64x128xf32>
      %62 = arith.addf %60, %61 : vector<64x128xf32>
      %63 = arith.divf %56, %62 : vector<64x128xf32>
      %cst_20 = arith.constant 1.000000e+00 : f32
      %64 = vector.broadcast %cst_20 : f32 to vector<64x128xf32>
      %65 = arith.subf %64, %63 : vector<64x128xf32>
      %66 = arith.maximumf %26, %38 : vector<64x128xf32>
      %67 = arith.minimumf %20, %32 : vector<64x128xf32>
      %68 = arith.subf %66, %67 : vector<64x128xf32>
      %cst_21 = arith.constant 0.000000e+00 : f32
      %69 = vector.broadcast %cst_21 : f32 to vector<64x128xf32>
      %70 = arith.maximumf %68, %69 : vector<64x128xf32>
      %71 = arith.maximumf %29, %41 : vector<64x128xf32>
      %72 = arith.minimumf %23, %35 : vector<64x128xf32>
      %73 = arith.subf %71, %72 : vector<64x128xf32>
      %cst_22 = arith.constant 0.000000e+00 : f32
      %74 = vector.broadcast %cst_22 : f32 to vector<64x128xf32>
      %75 = arith.maximumf %73, %74 : vector<64x128xf32>
      %76 = arith.mulf %70, %70 : vector<64x128xf32>
      %77 = arith.mulf %75, %75 : vector<64x128xf32>
      %78 = arith.addf %76, %77 : vector<64x128xf32>
      %cst_23 = arith.constant 9.99999997E-7 : f32
      %79 = vector.broadcast %cst_23 : f32 to vector<64x128xf32>
      %80 = arith.addf %78, %79 : vector<64x128xf32>
      %81 = arith.addf %32, %38 : vector<64x128xf32>
      %82 = arith.addf %20, %26 : vector<64x128xf32>
      %83 = arith.subf %81, %82 : vector<64x128xf32>
      %84 = arith.addf %35, %41 : vector<64x128xf32>
      %85 = arith.addf %23, %29 : vector<64x128xf32>
      %86 = arith.subf %84, %85 : vector<64x128xf32>
      %87 = arith.mulf %83, %83 : vector<64x128xf32>
      %88 = arith.mulf %86, %86 : vector<64x128xf32>
      %89 = arith.addf %87, %88 : vector<64x128xf32>
      %cst_24 = arith.constant 2.500000e-01 : f32
      %90 = vector.broadcast %cst_24 : f32 to vector<64x128xf32>
      %91 = arith.mulf %90, %89 : vector<64x128xf32>
      %92 = tpu.reciprocal %80 {approx = true} : vector<64x128xf32> -> vector<64x128xf32>
      %93 = arith.mulf %80, %92 : vector<64x128xf32>
      %cst_25 = arith.constant 2.000000e+00 : f32
      %94 = vector.broadcast %cst_25 : f32 to vector<64x128xf32>
      %95 = arith.subf %94, %93 : vector<64x128xf32>
      %96 = arith.mulf %92, %95 : vector<64x128xf32>
      %97 = arith.mulf %91, %96 : vector<64x128xf32>
      %cst_26 = arith.constant 9.99999997E-7 : f32
      %98 = vector.broadcast %cst_26 : f32 to vector<64x128xf32>
      %99 = arith.addf %43, %98 : vector<64x128xf32>
      %cst_27 = arith.constant 9.99999997E-7 : f32
      %100 = vector.broadcast %cst_27 : f32 to vector<64x128xf32>
      %101 = arith.addf %45, %100 : vector<64x128xf32>
      %102 = arith.mulf %99, %101 : vector<64x128xf32>
      %103 = arith.mulf %44, %99 : vector<64x128xf32>
      %104 = arith.mulf %42, %101 : vector<64x128xf32>
      %105 = arith.subf %103, %104 : vector<64x128xf32>
      %106 = arith.mulf %42, %44 : vector<64x128xf32>
      %107 = arith.addf %102, %106 : vector<64x128xf32>
      %108 = tpu.reciprocal %107 {approx = true} : vector<64x128xf32> -> vector<64x128xf32>
      %109 = arith.mulf %107, %108 : vector<64x128xf32>
      %cst_28 = arith.constant 2.000000e+00 : f32
      %110 = vector.broadcast %cst_28 : f32 to vector<64x128xf32>
      %111 = arith.subf %110, %109 : vector<64x128xf32>
      %112 = arith.mulf %108, %111 : vector<64x128xf32>
      %113 = arith.mulf %105, %112 : vector<64x128xf32>
      %cst_29 = arith.constant 0.000000e+00 : f32
      %114 = vector.broadcast %cst_29 : f32 to vector<64x128xf32>
      %115 = arith.cmpf olt, %113, %114 : vector<64x128xf32>
      %cst_30 = arith.constant -1.000000e+00 : f32
      %cst_31 = arith.constant 1.000000e+00 : f32
      %116 = vector.broadcast %cst_30 : f32 to vector<64x128xf32>
      %117 = vector.broadcast %cst_31 : f32 to vector<64x128xf32>
      %118 = arith.select %115, %116, %117 : vector<64x128xi1>, vector<64x128xf32>
      %119 = math.absf %113 : vector<64x128xf32>
      %cst_32 = arith.constant 2.41421366 : f32
      %120 = vector.broadcast %cst_32 : f32 to vector<64x128xf32>
      %121 = arith.cmpf ogt, %119, %120 : vector<64x128xf32>
      %cst_33 = arith.constant dense<true> : vector<64x128xi1>
      %122 = arith.xori %121, %cst_33 : vector<64x128xi1>
      %cst_34 = arith.constant 0.414213568 : f32
      %123 = vector.broadcast %cst_34 : f32 to vector<64x128xf32>
      %124 = arith.cmpf ogt, %119, %123 : vector<64x128xf32>
      %125 = arith.andi %122, %124 : vector<64x128xi1>
      %cst_35 = arith.constant 1.000000e+00 : f32
      %126 = vector.broadcast %cst_35 : f32 to vector<64x128xf32>
      %127 = arith.subf %119, %126 : vector<64x128xf32>
      %128 = arith.select %125, %127, %119 : vector<64x128xi1>, vector<64x128xf32>
      %cst_36 = arith.constant -1.000000e+00 : f32
      %129 = vector.broadcast %cst_36 : f32 to vector<64x128xf32>
      %130 = arith.select %121, %129, %128 : vector<64x128xi1>, vector<64x128xf32>
      %cst_37 = arith.constant 1.000000e+00 : f32
      %131 = vector.broadcast %cst_37 : f32 to vector<64x128xf32>
      %132 = arith.addf %119, %131 : vector<64x128xf32>
      %cst_38 = arith.constant 1.000000e+00 : f32
      %133 = vector.broadcast %cst_38 : f32 to vector<64x128xf32>
      %134 = arith.select %125, %132, %133 : vector<64x128xi1>, vector<64x128xf32>
      %135 = arith.select %121, %119, %134 : vector<64x128xi1>, vector<64x128xf32>
      %136 = tpu.reciprocal %135 {approx = true} : vector<64x128xf32> -> vector<64x128xf32>
      %137 = arith.mulf %135, %136 : vector<64x128xf32>
      %cst_39 = arith.constant 2.000000e+00 : f32
      %138 = vector.broadcast %cst_39 : f32 to vector<64x128xf32>
      %139 = arith.subf %138, %137 : vector<64x128xf32>
      %140 = arith.mulf %136, %139 : vector<64x128xf32>
      %141 = arith.mulf %130, %140 : vector<64x128xf32>
      %cst_40 = arith.constant 0.785398185 : f32
      %cst_41 = arith.constant 0.000000e+00 : f32
      %142 = vector.broadcast %cst_40 : f32 to vector<64x128xf32>
      %143 = vector.broadcast %cst_41 : f32 to vector<64x128xf32>
      %144 = arith.select %125, %142, %143 : vector<64x128xi1>, vector<64x128xf32>
      %cst_42 = arith.constant 1.57079637 : f32
      %145 = vector.broadcast %cst_42 : f32 to vector<64x128xf32>
      %146 = arith.select %121, %145, %144 : vector<64x128xi1>, vector<64x128xf32>
      %147 = arith.mulf %141, %141 : vector<64x128xf32>
      %cst_43 = arith.constant 0.0805374458 : f32
      %148 = vector.broadcast %cst_43 : f32 to vector<64x128xf32>
      %149 = arith.mulf %148, %147 : vector<64x128xf32>
      %cst_44 = arith.constant 0.138776854 : f32
      %150 = vector.broadcast %cst_44 : f32 to vector<64x128xf32>
      %151 = arith.subf %149, %150 : vector<64x128xf32>
      %152 = arith.mulf %151, %147 : vector<64x128xf32>
      %cst_45 = arith.constant 0.199777111 : f32
      %153 = vector.broadcast %cst_45 : f32 to vector<64x128xf32>
      %154 = arith.addf %152, %153 : vector<64x128xf32>
      %155 = arith.mulf %154, %147 : vector<64x128xf32>
      %cst_46 = arith.constant 0.333329499 : f32
      %156 = vector.broadcast %cst_46 : f32 to vector<64x128xf32>
      %157 = arith.subf %155, %156 : vector<64x128xf32>
      %158 = arith.mulf %157, %147 : vector<64x128xf32>
      %159 = arith.mulf %158, %141 : vector<64x128xf32>
      %160 = arith.addf %146, %159 : vector<64x128xf32>
      %161 = arith.addf %160, %141 : vector<64x128xf32>
      %162 = arith.mulf %118, %161 : vector<64x128xf32>
      %163 = arith.mulf %107, %102 : vector<64x128xf32>
      %cst_47 = arith.constant 0.000000e+00 : f32
      %164 = vector.broadcast %cst_47 : f32 to vector<64x128xf32>
      %165 = arith.cmpf olt, %163, %164 : vector<64x128xf32>
      %166 = arith.mulf %44, %101 : vector<64x128xf32>
      %cst_48 = arith.constant 0.000000e+00 : f32
      %167 = vector.broadcast %cst_48 : f32 to vector<64x128xf32>
      %168 = arith.cmpf ogt, %166, %167 : vector<64x128xf32>
      %cst_49 = arith.constant 3.14159274 : f32
      %cst_50 = arith.constant -3.14159274 : f32
      %169 = vector.broadcast %cst_49 : f32 to vector<64x128xf32>
      %170 = vector.broadcast %cst_50 : f32 to vector<64x128xf32>
      %171 = arith.select %168, %169, %170 : vector<64x128xi1>, vector<64x128xf32>
      %cst_51 = arith.constant 0.000000e+00 : f32
      %172 = vector.broadcast %cst_51 : f32 to vector<64x128xf32>
      %173 = arith.select %165, %171, %172 : vector<64x128xi1>, vector<64x128xf32>
      %174 = arith.addf %162, %173 : vector<64x128xf32>
      %cst_52 = arith.constant 0.405284733 : f32
      %175 = vector.broadcast %cst_52 : f32 to vector<64x128xf32>
      %176 = arith.mulf %175, %174 : vector<64x128xf32>
      %177 = arith.mulf %176, %174 : vector<64x128xf32>
      %178 = arith.addf %65, %97 : vector<64x128xf32>
      %179 = arith.mulf %177, %177 : vector<64x128xf32>
      %cst_53 = arith.constant 5.000000e-01 : f32
      %180 = vector.broadcast %cst_53 : f32 to vector<64x128xf32>
      %181 = arith.mulf %180, %179 : vector<64x128xf32>
      %182 = arith.addf %65, %177 : vector<64x128xf32>
      %183 = tpu.reciprocal %182 {approx = true} : vector<64x128xf32> -> vector<64x128xf32>
      %184 = arith.mulf %182, %183 : vector<64x128xf32>
      %cst_54 = arith.constant 2.000000e+00 : f32
      %185 = vector.broadcast %cst_54 : f32 to vector<64x128xf32>
      %186 = arith.subf %185, %184 : vector<64x128xf32>
      %187 = arith.mulf %183, %186 : vector<64x128xf32>
      %188 = arith.mulf %181, %187 : vector<64x128xf32>
      %189 = arith.addf %178, %188 : vector<64x128xf32>
      %c0_55 = arith.constant 0 : index
      %c0_56 = arith.constant 0 : index
      %c0_57 = arith.constant 0 : index
      %190 = vector.load %arg5[%c0_55, %c0_56, %c0_57] : memref<1x64x128xf32, #tpu.memory_space<vmem>>, vector<1x64x128xf32>
      %191 = vector.shape_cast %190 : vector<1x64x128xf32> to vector<64x128xf32>
      %192 = arith.addf %191, %189 : vector<64x128xf32>
      %c0_58 = arith.constant 0 : index
      %c0_59 = arith.constant 0 : index
      %c0_60 = arith.constant 0 : index
      %193 = vector.load %arg5[%c0_58, %c0_59, %c0_60] : memref<1x64x128xf32, #tpu.memory_space<vmem>>, vector<1x64x128xf32>
      %194 = vector.shape_cast %193 : vector<1x64x128xf32> to vector<64x128xf32>
      %195 = vector.shape_cast %192 : vector<64x128xf32> to vector<1x64x128xf32>
      tpu.vector_store %arg5[%c0_58, %c0_59, %c0_60], %195 {strides = array<i32>} : memref<1x64x128xf32, #tpu.memory_space<vmem>>, vector<1x64x128xf32>,
      %c1_i32_61 = arith.constant 1 : i32
    } else {
    }
    %true = arith.constant true
    %12 = arith.xori %8, %true : i1
    %13 = arith.andi %9, %12 : i1
    %14 = arith.extui %13 : i1 to i32
    %c0_i32_3 = arith.constant 0 : i32
    %15 = arith.cmpi ne, %14, %c0_i32_3 : i32
    scf.if %15 {
      %c0_i32_4 = arith.constant 0 : i32
      %c64_i32 = arith.constant 64 : i32
      %16 = arith.muli %c0_i32_4, %c64_i32 : i32
      %17 = tpu.assume_multiple %16, 64 : i32
      %c0_5 = arith.constant 0 : index
      %18 = arith.index_cast %17 : i32 to index
      %c0_6 = arith.constant 0 : index
      %19 = vector.load %arg3[%c0_5, %18, %c0_6] : memref<4x64x128xf32, #tpu.memory_space<vmem>>, vector<1x64x128xf32>
      %20 = vector.shape_cast %19 : vector<1x64x128xf32> to vector<64x128xf32>
      %c1 = arith.constant 1 : index
      %21 = arith.index_cast %17 : i32 to index
      %c0_7 = arith.constant 0 : index
      %22 = vector.load %arg3[%c1, %21, %c0_7] : memref<4x64x128xf32, #tpu.memory_space<vmem>>, vector<1x64x128xf32>
      %23 = vector.shape_cast %22 : vector<1x64x128xf32> to vector<64x128xf32>
      %c2 = arith.constant 2 : index
      %24 = arith.index_cast %17 : i32 to index
      %c0_8 = arith.constant 0 : index
      %25 = vector.load %arg3[%c2, %24, %c0_8] : memref<4x64x128xf32, #tpu.memory_space<vmem>>, vector<1x64x128xf32>
      %26 = vector.shape_cast %25 : vector<1x64x128xf32> to vector<64x128xf32>
      %c3 = arith.constant 3 : index
      %27 = arith.index_cast %17 : i32 to index
      %c0_9 = arith.constant 0 : index
      %28 = vector.load %arg3[%c3, %27, %c0_9] : memref<4x64x128xf32, #tpu.memory_space<vmem>>, vector<1x64x128xf32>
      %29 = vector.shape_cast %28 : vector<1x64x128xf32> to vector<64x128xf32>
      %c0_10 = arith.constant 0 : index
      %30 = arith.index_cast %17 : i32 to index
      %c0_11 = arith.constant 0 : index
      %31 = vector.load %arg4[%c0_10, %30, %c0_11] : memref<4x64x128xf32, #tpu.memory_space<vmem>>, vector<1x64x128xf32>
      %32 = vector.shape_cast %31 : vector<1x64x128xf32> to vector<64x128xf32>
      %c1_12 = arith.constant 1 : index
      %33 = arith.index_cast %17 : i32 to index
      %c0_13 = arith.constant 0 : index
      %34 = vector.load %arg4[%c1_12, %33, %c0_13] : memref<4x64x128xf32, #tpu.memory_space<vmem>>, vector<1x64x128xf32>
      %35 = vector.shape_cast %34 : vector<1x64x128xf32> to vector<64x128xf32>
      %c2_14 = arith.constant 2 : index
      %36 = arith.index_cast %17 : i32 to index
      %c0_15 = arith.constant 0 : index
      %37 = vector.load %arg4[%c2_14, %36, %c0_15] : memref<4x64x128xf32, #tpu.memory_space<vmem>>, vector<1x64x128xf32>
      %38 = vector.shape_cast %37 : vector<1x64x128xf32> to vector<64x128xf32>
      %c3_16 = arith.constant 3 : index
      %39 = arith.index_cast %17 : i32 to index
      %c0_17 = arith.constant 0 : index
      %40 = vector.load %arg4[%c3_16, %39, %c0_17] : memref<4x64x128xf32, #tpu.memory_space<vmem>>, vector<1x64x128xf32>
      %41 = vector.shape_cast %40 : vector<1x64x128xf32> to vector<64x128xf32>
      %42 = arith.subf %26, %20 : vector<64x128xf32>
      %43 = arith.subf %29, %23 : vector<64x128xf32>
      %44 = arith.subf %38, %32 : vector<64x128xf32>
      %45 = arith.subf %41, %35 : vector<64x128xf32>
      %46 = arith.minimumf %26, %38 : vector<64x128xf32>
      %47 = arith.maximumf %20, %32 : vector<64x128xf32>
      %48 = arith.subf %46, %47 : vector<64x128xf32>
      %cst = arith.constant 0.000000e+00 : f32
      %49 = vector.broadcast %cst : f32 to vector<64x128xf32>
      %50 = arith.maximumf %48, %49 : vector<64x128xf32>
      %51 = arith.minimumf %29, %41 : vector<64x128xf32>
      %52 = arith.maximumf %23, %35 : vector<64x128xf32>
      %53 = arith.subf %51, %52 : vector<64x128xf32>
      %cst_18 = arith.constant 0.000000e+00 : f32
      %54 = vector.broadcast %cst_18 : f32 to vector<64x128xf32>
      %55 = arith.maximumf %53, %54 : vector<64x128xf32>
      %56 = arith.mulf %50, %55 : vector<64x128xf32>
      %57 = arith.mulf %42, %43 : vector<64x128xf32>
      %58 = arith.mulf %44, %45 : vector<64x128xf32>
      %59 = arith.addf %57, %58 : vector<64x128xf32>
      %60 = arith.subf %59, %56 : vector<64x128xf32>
      %cst_19 = arith.constant 9.99999997E-7 : f32
      %61 = vector.broadcast %cst_19 : f32 to vector<64x128xf32>
      %62 = arith.addf %60, %61 : vector<64x128xf32>
      %63 = arith.divf %56, %62 : vector<64x128xf32>
      %cst_20 = arith.constant 1.000000e+00 : f32
      %64 = vector.broadcast %cst_20 : f32 to vector<64x128xf32>
      %65 = arith.subf %64, %63 : vector<64x128xf32>
      %66 = arith.maximumf %26, %38 : vector<64x128xf32>
      %67 = arith.minimumf %20, %32 : vector<64x128xf32>
      %68 = arith.subf %66, %67 : vector<64x128xf32>
      %cst_21 = arith.constant 0.000000e+00 : f32
      %69 = vector.broadcast %cst_21 : f32 to vector<64x128xf32>
      %70 = arith.maximumf %68, %69 : vector<64x128xf32>
      %71 = arith.maximumf %29, %41 : vector<64x128xf32>
      %72 = arith.minimumf %23, %35 : vector<64x128xf32>
      %73 = arith.subf %71, %72 : vector<64x128xf32>
      %cst_22 = arith.constant 0.000000e+00 : f32
      %74 = vector.broadcast %cst_22 : f32 to vector<64x128xf32>
      %75 = arith.maximumf %73, %74 : vector<64x128xf32>
      %76 = arith.mulf %70, %70 : vector<64x128xf32>
      %77 = arith.mulf %75, %75 : vector<64x128xf32>
      %78 = arith.addf %76, %77 : vector<64x128xf32>
      %cst_23 = arith.constant 9.99999997E-7 : f32
      %79 = vector.broadcast %cst_23 : f32 to vector<64x128xf32>
      %80 = arith.addf %78, %79 : vector<64x128xf32>
      %81 = arith.addf %32, %38 : vector<64x128xf32>
      %82 = arith.addf %20, %26 : vector<64x128xf32>
      %83 = arith.subf %81, %82 : vector<64x128xf32>
      %84 = arith.addf %35, %41 : vector<64x128xf32>
      %85 = arith.addf %23, %29 : vector<64x128xf32>
      %86 = arith.subf %84, %85 : vector<64x128xf32>
      %87 = arith.mulf %83, %83 : vector<64x128xf32>
      %88 = arith.mulf %86, %86 : vector<64x128xf32>
      %89 = arith.addf %87, %88 : vector<64x128xf32>
      %cst_24 = arith.constant 2.500000e-01 : f32
      %90 = vector.broadcast %cst_24 : f32 to vector<64x128xf32>
      %91 = arith.mulf %90, %89 : vector<64x128xf32>
      %92 = tpu.reciprocal %80 {approx = true} : vector<64x128xf32> -> vector<64x128xf32>
      %93 = arith.mulf %80, %92 : vector<64x128xf32>
      %cst_25 = arith.constant 2.000000e+00 : f32
      %94 = vector.broadcast %cst_25 : f32 to vector<64x128xf32>
      %95 = arith.subf %94, %93 : vector<64x128xf32>
      %96 = arith.mulf %92, %95 : vector<64x128xf32>
      %97 = arith.mulf %91, %96 : vector<64x128xf32>
      %cst_26 = arith.constant 9.99999997E-7 : f32
      %98 = vector.broadcast %cst_26 : f32 to vector<64x128xf32>
      %99 = arith.addf %43, %98 : vector<64x128xf32>
      %cst_27 = arith.constant 9.99999997E-7 : f32
      %100 = vector.broadcast %cst_27 : f32 to vector<64x128xf32>
      %101 = arith.addf %45, %100 : vector<64x128xf32>
      %102 = arith.mulf %99, %101 : vector<64x128xf32>
      %103 = arith.mulf %44, %99 : vector<64x128xf32>
      %104 = arith.mulf %42, %101 : vector<64x128xf32>
      %105 = arith.subf %103, %104 : vector<64x128xf32>
      %106 = arith.mulf %42, %44 : vector<64x128xf32>
      %107 = arith.addf %102, %106 : vector<64x128xf32>
      %108 = tpu.reciprocal %107 {approx = true} : vector<64x128xf32> -> vector<64x128xf32>
      %109 = arith.mulf %107, %108 : vector<64x128xf32>
      %cst_28 = arith.constant 2.000000e+00 : f32
      %110 = vector.broadcast %cst_28 : f32 to vector<64x128xf32>
      %111 = arith.subf %110, %109 : vector<64x128xf32>
      %112 = arith.mulf %108, %111 : vector<64x128xf32>
      %113 = arith.mulf %105, %112 : vector<64x128xf32>
      %cst_29 = arith.constant 0.000000e+00 : f32
      %114 = vector.broadcast %cst_29 : f32 to vector<64x128xf32>
      %115 = arith.cmpf olt, %113, %114 : vector<64x128xf32>
      %cst_30 = arith.constant -1.000000e+00 : f32
      %cst_31 = arith.constant 1.000000e+00 : f32
      %116 = vector.broadcast %cst_30 : f32 to vector<64x128xf32>
      %117 = vector.broadcast %cst_31 : f32 to vector<64x128xf32>
      %118 = arith.select %115, %116, %117 : vector<64x128xi1>, vector<64x128xf32>
      %119 = math.absf %113 : vector<64x128xf32>
      %cst_32 = arith.constant 2.41421366 : f32
      %120 = vector.broadcast %cst_32 : f32 to vector<64x128xf32>
      %121 = arith.cmpf ogt, %119, %120 : vector<64x128xf32>
      %cst_33 = arith.constant dense<true> : vector<64x128xi1>
      %122 = arith.xori %121, %cst_33 : vector<64x128xi1>
      %cst_34 = arith.constant 0.414213568 : f32
      %123 = vector.broadcast %cst_34 : f32 to vector<64x128xf32>
      %124 = arith.cmpf ogt, %119, %123 : vector<64x128xf32>
      %125 = arith.andi %122, %124 : vector<64x128xi1>
      %cst_35 = arith.constant 1.000000e+00 : f32
      %126 = vector.broadcast %cst_35 : f32 to vector<64x128xf32>
      %127 = arith.subf %119, %126 : vector<64x128xf32>
      %128 = arith.select %125, %127, %119 : vector<64x128xi1>, vector<64x128xf32>
      %cst_36 = arith.constant -1.000000e+00 : f32
      %129 = vector.broadcast %cst_36 : f32 to vector<64x128xf32>
      %130 = arith.select %121, %129, %128 : vector<64x128xi1>, vector<64x128xf32>
      %cst_37 = arith.constant 1.000000e+00 : f32
      %131 = vector.broadcast %cst_37 : f32 to vector<64x128xf32>
      %132 = arith.addf %119, %131 : vector<64x128xf32>
      %cst_38 = arith.constant 1.000000e+00 : f32
      %133 = vector.broadcast %cst_38 : f32 to vector<64x128xf32>
      %134 = arith.select %125, %132, %133 : vector<64x128xi1>, vector<64x128xf32>
      %135 = arith.select %121, %119, %134 : vector<64x128xi1>, vector<64x128xf32>
      %136 = tpu.reciprocal %135 {approx = true} : vector<64x128xf32> -> vector<64x128xf32>
      %137 = arith.mulf %135, %136 : vector<64x128xf32>
      %cst_39 = arith.constant 2.000000e+00 : f32
      %138 = vector.broadcast %cst_39 : f32 to vector<64x128xf32>
      %139 = arith.subf %138, %137 : vector<64x128xf32>
      %140 = arith.mulf %136, %139 : vector<64x128xf32>
      %141 = arith.mulf %130, %140 : vector<64x128xf32>
      %cst_40 = arith.constant 0.785398185 : f32
      %cst_41 = arith.constant 0.000000e+00 : f32
      %142 = vector.broadcast %cst_40 : f32 to vector<64x128xf32>
      %143 = vector.broadcast %cst_41 : f32 to vector<64x128xf32>
      %144 = arith.select %125, %142, %143 : vector<64x128xi1>, vector<64x128xf32>
      %cst_42 = arith.constant 1.57079637 : f32
      %145 = vector.broadcast %cst_42 : f32 to vector<64x128xf32>
      %146 = arith.select %121, %145, %144 : vector<64x128xi1>, vector<64x128xf32>
      %147 = arith.mulf %141, %141 : vector<64x128xf32>
      %cst_43 = arith.constant 0.0805374458 : f32
      %148 = vector.broadcast %cst_43 : f32 to vector<64x128xf32>
      %149 = arith.mulf %148, %147 : vector<64x128xf32>
      %cst_44 = arith.constant 0.138776854 : f32
      %150 = vector.broadcast %cst_44 : f32 to vector<64x128xf32>
      %151 = arith.subf %149, %150 : vector<64x128xf32>
      %152 = arith.mulf %151, %147 : vector<64x128xf32>
      %cst_45 = arith.constant 0.199777111 : f32
      %153 = vector.broadcast %cst_45 : f32 to vector<64x128xf32>
      %154 = arith.addf %152, %153 : vector<64x128xf32>
      %155 = arith.mulf %154, %147 : vector<64x128xf32>
      %cst_46 = arith.constant 0.333329499 : f32
      %156 = vector.broadcast %cst_46 : f32 to vector<64x128xf32>
      %157 = arith.subf %155, %156 : vector<64x128xf32>
      %158 = arith.mulf %157, %147 : vector<64x128xf32>
      %159 = arith.mulf %158, %141 : vector<64x128xf32>
      %160 = arith.addf %146, %159 : vector<64x128xf32>
      %161 = arith.addf %160, %141 : vector<64x128xf32>
      %162 = arith.mulf %118, %161 : vector<64x128xf32>
      %163 = arith.mulf %107, %102 : vector<64x128xf32>
      %cst_47 = arith.constant 0.000000e+00 : f32
      %164 = vector.broadcast %cst_47 : f32 to vector<64x128xf32>
      %165 = arith.cmpf olt, %163, %164 : vector<64x128xf32>
      %166 = arith.mulf %44, %101 : vector<64x128xf32>
      %cst_48 = arith.constant 0.000000e+00 : f32
      %167 = vector.broadcast %cst_48 : f32 to vector<64x128xf32>
      %168 = arith.cmpf ogt, %166, %167 : vector<64x128xf32>
      %cst_49 = arith.constant 3.14159274 : f32
      %cst_50 = arith.constant -3.14159274 : f32
      %169 = vector.broadcast %cst_49 : f32 to vector<64x128xf32>
      %170 = vector.broadcast %cst_50 : f32 to vector<64x128xf32>
      %171 = arith.select %168, %169, %170 : vector<64x128xi1>, vector<64x128xf32>
      %cst_51 = arith.constant 0.000000e+00 : f32
      %172 = vector.broadcast %cst_51 : f32 to vector<64x128xf32>
      %173 = arith.select %165, %171, %172 : vector<64x128xi1>, vector<64x128xf32>
      %174 = arith.addf %162, %173 : vector<64x128xf32>
      %cst_52 = arith.constant 0.405284733 : f32
      %175 = vector.broadcast %cst_52 : f32 to vector<64x128xf32>
      %176 = arith.mulf %175, %174 : vector<64x128xf32>
      %177 = arith.mulf %176, %174 : vector<64x128xf32>
      %178 = arith.addf %65, %97 : vector<64x128xf32>
      %179 = arith.mulf %177, %177 : vector<64x128xf32>
      %cst_53 = arith.constant 5.000000e-01 : f32
      %180 = vector.broadcast %cst_53 : f32 to vector<64x128xf32>
      %181 = arith.mulf %180, %179 : vector<64x128xf32>
      %182 = arith.addf %65, %177 : vector<64x128xf32>
      %183 = tpu.reciprocal %182 {approx = true} : vector<64x128xf32> -> vector<64x128xf32>
      %184 = arith.mulf %182, %183 : vector<64x128xf32>
      %cst_54 = arith.constant 2.000000e+00 : f32
      %185 = vector.broadcast %cst_54 : f32 to vector<64x128xf32>
      %186 = arith.subf %185, %184 : vector<64x128xf32>
      %187 = arith.mulf %183, %186 : vector<64x128xf32>
      %188 = arith.mulf %181, %187 : vector<64x128xf32>
      %189 = arith.addf %178, %188 : vector<64x128xf32>
      %190 = tpu.iota {dimensions = array<i32: 0>} : vector<64x128xi32>
      %191 = tpu.iota {dimensions = array<i32: 1>} : vector<64x128xi32>
      %192 = vector.broadcast %17 : i32 to vector<64x128xi32>
      %193 = arith.addi %192, %190 : vector<64x128xi32>
      %c128_i32 = arith.constant 128 : i32
      %194 = vector.broadcast %c128_i32 : i32 to vector<64x128xi32>
      %195 = arith.muli %193, %194 : vector<64x128xi32>
      %196 = vector.broadcast %6 : i32 to vector<64x128xi32>
      %197 = arith.addi %196, %195 : vector<64x128xi32>
      %198 = arith.addi %197, %191 : vector<64x128xi32>
      %199 = vector.broadcast %5 : i32 to vector<64x128xi32>
      %200 = arith.cmpi slt, %198, %199 : vector<64x128xi32>
      %cst_55 = arith.constant 0.000000e+00 : f32
      %201 = vector.broadcast %cst_55 : f32 to vector<64x128xf32>
      %202 = arith.select %200, %189, %201 : vector<64x128xi1>, vector<64x128xf32>
      %c0_56 = arith.constant 0 : index
      %c0_57 = arith.constant 0 : index
      %c0_58 = arith.constant 0 : index
      %203 = vector.load %arg5[%c0_56, %c0_57, %c0_58] : memref<1x64x128xf32, #tpu.memory_space<vmem>>, vector<1x64x128xf32>
      %204 = vector.shape_cast %203 : vector<1x64x128xf32> to vector<64x128xf32>
      %205 = arith.addf %204, %202 : vector<64x128xf32>
      %c0_59 = arith.constant 0 : index
      %c0_60 = arith.constant 0 : index
      %c0_61 = arith.constant 0 : index
      %206 = vector.load %arg5[%c0_59, %c0_60, %c0_61] : memref<1x64x128xf32, #tpu.memory_space<vmem>>, vector<1x64x128xf32>
      %207 = vector.shape_cast %206 : vector<1x64x128xf32> to vector<64x128xf32>
      %208 = vector.shape_cast %205 : vector<64x128xf32> to vector<1x64x128xf32>
      tpu.vector_store %arg5[%c0_59, %c0_60, %c0_61], %208 {strides = array<i32>} : memref<1x64x128xf32, #tpu.memory_space<vmem>>, vector<1x64x128xf32>,
      %c1_i32_62 = arith.constant 1 : i32
    } else {
    }
    return
  }
  func.func @transform_0(%arg0: i32, %arg1: i32, %arg2: memref<1xi32, #tpu.memory_space<smem>>) -> (i32, i32, i32) {
    %c1_i32 = arith.constant 1 : i32
    %0 = arith.muli %arg0, %c1_i32 : i32
    %1 = arith.addi %0, %arg1 : i32
    %c0_i32 = arith.constant 0 : i32
    %c0_i32_0 = arith.constant 0 : i32
    %c0_i32_1 = arith.constant 0 : i32
    return %c0_i32, %1, %c0_i32_0 : i32, i32, i32
  }
  func.func @transform_1(%arg0: i32, %arg1: i32, %arg2: memref<1xi32, #tpu.memory_space<smem>>) -> (i32, i32, i32) {
    %c1_i32 = arith.constant 1 : i32
    %0 = arith.muli %arg0, %c1_i32 : i32
    %1 = arith.addi %0, %arg1 : i32
    %c0_i32 = arith.constant 0 : i32
    %c0_i32_0 = arith.constant 0 : i32
    %c0_i32_1 = arith.constant 0 : i32
    return %c0_i32, %1, %c0_i32_0 : i32, i32, i32
  }
  func.func @transform_2(%arg0: i32, %arg1: i32, %arg2: memref<1xi32, #tpu.memory_space<smem>>) -> (i32, i32, i32) {
    %c0_i32 = arith.constant 0 : i32
    %c0_i32_0 = arith.constant 0 : i32
    %c0_i32_1 = arith.constant 0 : i32
    return %arg0, %c0_i32, %c0_i32_0 : i32, i32, i32
  }
}

</mosaic_0001>

<llo_original>
// kernel: tpu_custom_call.1
$region0: #{tpu_custom_call.1}
  #allocation0 [shape = 'u32[]', space=smem, size = 0x4, offset = 0x4, fixed_abs, tag = 'smem constant byte address 0x4 - core index']
  #allocation1 [shape = 'u32[144,128]{1,0:T(1,128)}', space=vmem, size = 0x12000, scoped, tag = 'internal scratch']
  #allocation2 [shape = 's32[1]{0}', space=sflag, size = 0x4, scoped, tag = 'scoped memory for tpu_custom_call.1']
  #allocation3 [shape = 's32[1]{0:T(128)S(6)}', space=smem, size = 0x200, scoped, tag = 'prefetched SMEM operand 0']
  #allocation10 [shape = 's32[]', space=sflag, size = 0x4, offset = 0, fixed_abs, tag = 'sflag constant byte address 0x0 - dummy sync flag']
  #allocation12 [shape = 's32[]', space=sflag, size = 0x4, offset = 0, fixed_abs, tag = 'sflag constant byte address 0x0 - dummy sync flag']
  %s0 = inlined_call_operand.<no memory space> [shape: s32[1], index: 0, kind: input, shape index: {}]
  %s1 = inlined_call_operand.hbm [shape: f32[4,128,128], index: 1, kind: input, shape index: {}]
  %s2 = inlined_call_operand.hbm [shape: f32[4,128,128], index: 2, kind: input, shape index: {}]
  %s3 = inlined_call_operand.hbm [shape: f32[2,64,128], index: 3, kind: output, shape index: {}]
  %s4 = sld [smem:[#allocation0]]
  $region61: #{tpu_custom_call.1} parent=0
    _
  %s6 = ssub.s32 1, %s4
  %s7 = scalar_select 0, %s6, %s4
  %8 = sst [smem:[#allocation3]] %s0
  $region1: #{tpu_custom_call.1} parent=0
    #allocation4 [shape = 'u8[262144]{0}', space=vmem, size = 0x40000, scoped, tag = 'input window, operand 1']
    #allocation5 [shape = 's32[2]{0}', space=sflag, size = 0x8, scoped, tag = 'scoped memory for tpu_custom_call.1']
    #allocation6 [shape = 's32[2]{0}', space=sflag, size = 0x8, scoped, tag = 'scoped memory for tpu_custom_call.1']
    #allocation7 [shape = 'u8[262144]{0}', space=vmem, size = 0x40000, scoped, tag = 'input window, operand 2']
    #allocation8 [shape = 's32[2]{0}', space=sflag, size = 0x8, scoped, tag = 'scoped memory for tpu_custom_call.1']
    #allocation9 [shape = 'u8[65536]{0}', space=vmem, size = 0x10000, scoped, tag = 'output window, operand 0']
    %9 = vsyncpa [#allocation5], 0
    %s10 = scalar_lea.sflag [#allocation5], 1
    %11 = vsyncpa %s10, 0
    %12 = vsyncpa [#allocation8], 0
    %s13 = scalar_lea.sflag [#allocation8], 1
    %14 = vsyncpa %s13, 0
    %15 = vsyncpa [#allocation6], 0
    %s16 = scalar_lea.sflag [#allocation6], 1
    %17 = vsyncpa %s16, 0
    loop: start=0, step=1, limit=4
    $region2: #{tpu_custom_call.1} parent=1 // loop_pre_header
      _
    $region3: #{tpu_custom_call.1} parent=1 // loop_header
      %s19 = sphi 0, %s23
      %p20 = scmp.ge.s32.totalorder %s19, 4
      %s26 = sphi 0, %s38
      %s27 = sphi 0, %s34
      %s28 = sphi 0, %s26
      %s29 = sphi 0, %s27
      %s30 = sphi 0, %s28
      %s31 = sphi 0, %s29
      %s43 = sphi 0, %s45
      %s46 = sphi 0, %s43
      %s47 = sphi 0, %s46
      %s63 = sphi 0, %s47
      %s71 = sphi 0, %s73
      %s74 = sphi 0, %s71
      %s75 = sphi 0, %s74
      %s91 = sphi 0, %s75
      %s97 = sphi 0, %s99
      %s100 = sphi 0, %s97
      %s101 = sphi 0, %s100
      %s117 = sphi 0, %s101
    $region4: #{tpu_custom_call.1} parent=1 // loop_header_branch
      %22 = sbr.rel (%p20) target = $region8
    $region5: #{tpu_custom_call.1} parent=1 // loop_body
      %s24 = ssub.s32 %s19, 1
      %s25 = ssub.s32 %s19, 2
      %s32 = sadd.s32 1, %s27
      %p33 = scmp.ge.s32.totalorder %s32, 1
      %s34 = scalar_select %p33, 0, %s32
      %s35 = sadd.s32 1, %s26
      %s36 = scalar_select %p33, %s35, %s26
      %p37 = scmp.ge.s32.totalorder %s36, 2
      %s38 = scalar_select %p37, 0, %s36
      %s39 = sadd.s32 %s26, %s27
      %s40 = sadd.s32 %s38, %s34
      %s41 = ssub.s32 %s39, %s40
      %p42 = scmp.eq.s32.totalorder %s41, 0
      %s44 = sadd.s32 %s43, 1
      %s45 = scalar_select %p42, %s43, %s44
      %p48 = pneg %p42
      %p49 = scmp.eq.s32.totalorder %s19, 1
      %p50 = por %p48, %p49
      %p51 = scmp.ne.s32.totalorder %s43, %s46
      %p52 = scmp.eq.s32.totalorder %s19, 0
      %p53 = por %p51, %p52
      %p54 = scmp.ne.s32.totalorder %s43, %s46
      %p55 = scmp.eq.s32.totalorder %s24, 1
      %p56 = por %p54, %p55
      %p57 = scmp.ne.s32.totalorder %s46, %s47
      %p58 = scmp.eq.s32.totalorder %s24, 0
      %p59 = por %p57, %p58
      %p60 = scmp.ne.s32.totalorder %s46, %s47
      %p61 = scmp.eq.s32.totalorder %s25, 1
      %p62 = por %p60, %p61
      %p64 = scmp.ne.s32.totalorder %s47, %s63
      %p65 = scmp.eq.s32.totalorder %s25, 0
      %p66 = por %p64, %p65
      %s67 = sadd.s32 %s26, %s27
      %s68 = sadd.s32 %s38, %s34
      %s69 = ssub.s32 %s67, %s68
      %p70 = scmp.eq.s32.totalorder %s69, 0
      %s72 = sadd.s32 %s71, 1
      %s73 = scalar_select %p70, %s71, %s72
      %p76 = pneg %p70
      %p77 = scmp.eq.s32.totalorder %s19, 1
      %p78 = por %p76, %p77
      %p79 = scmp.ne.s32.totalorder %s71, %s74
      %p80 = scmp.eq.s32.totalorder %s19, 0
      %p81 = por %p79, %p80
      %p82 = scmp.ne.s32.totalorder %s71, %s74
      %p83 = scmp.eq.s32.totalorder %s24, 1
      %p84 = por %p82, %p83
      %p85 = scmp.ne.s32.totalorder %s74, %s75
      %p86 = scmp.eq.s32.totalorder %s24, 0
      %p87 = por %p85, %p86
      %p88 = scmp.ne.s32.totalorder %s74, %s75
      %p89 = scmp.eq.s32.totalorder %s25, 1
      %p90 = por %p88, %p89
      %p92 = scmp.ne.s32.totalorder %s75, %s91
      %p93 = scmp.eq.s32.totalorder %s25, 0
      %p94 = por %p92, %p93
      %s95 = ssub.s32 %s26, %s38
      %p96 = scmp.eq.s32.totalorder %s95, 0
      %s98 = sadd.s32 %s97, 1
      %s99 = scalar_select %p96, %s97, %s98
      %p102 = pneg %p96
      %p103 = scmp.eq.s32.totalorder %s19, 1
      %p104 = por %p102, %p103
      %p105 = scmp.ne.s32.totalorder %s97, %s100
      %p106 = scmp.eq.s32.totalorder %s19, 0
      %p107 = por %p105, %p106
      %p108 = scmp.ne.s32.totalorder %s97, %s100
      %p109 = scmp.eq.s32.totalorder %s24, 1
      %p110 = por %p108, %p109
      %p111 = scmp.ne.s32.totalorder %s100, %s101
      %p112 = scmp.eq.s32.totalorder %s24, 0
      %p113 = por %p111, %p112
      %p114 = scmp.ne.s32.totalorder %s100, %s101
      %p115 = scmp.eq.s32.totalorder %s25, 1
      %p116 = por %p114, %p115
      %p118 = scmp.ne.s32.totalorder %s101, %s117
      %p119 = scmp.eq.s32.totalorder %s25, 0
      %p120 = por %p118, %p119
      %p121 = scmp.le.s32.totalorder 1, %s19
      %p122 = scmp.lt.s32.totalorder %s19, 3
      %p123 = pnand %p121, %p122
      %p124 = pneg %p123
      // Predicated region
      $region9: #{tpu_custom_call.1} parent=5 // pred_check
        _
      $region10: #{tpu_custom_call.1} parent=5 // pred_check_branch
        %126 = sbr.rel (%p123) target = $region12
      $region11: #{tpu_custom_call.1} parent=5 // pred_region
        %s127 = ssub.s32 %s19, 1
      $region12: #{tpu_custom_call.1} parent=5 // pred_fallthru
        _
      %p128 = scmp.lt.s32.totalorder %s19, 2
      // Predicated region
      $region13: #{tpu_custom_call.1} parent=5 // pred_check
        %p129 = pneg %p128
      $region14: #{tpu_custom_call.1} parent=5 // pred_check_branch
        %131 = sbr.rel (%p129) target = $region16
      $region15: #{tpu_custom_call.1} parent=5 // pred_region
        // Predicated region
        $region17: #{tpu_custom_call.1} parent=15 // pred_check
          %p132 = pneg %p53
        $region18: #{tpu_custom_call.1} parent=15 // pred_check_branch
          %134 = sbr.rel (%p132) target = $region20
        $region19: #{tpu_custom_call.1} parent=15 // pred_region
          #allocation11 [shape = 'u32[6]{0}', space=smem, size = 0x18, scoped, tag = 'DMA stride descriptor']
          %s135 = sand.u32 %s43, 1
          %s136 = scalar_lea.sflag [#allocation5], %s135
          %s137 = sand.u32 %s43, 1
          %s138 = smul.addr %s137, 256
          %s139 = scalar_lea.vmem [#allocation4], %s138
          %s140 = sadd.s32 %s26, %s27
          %s141 = smul.u32 8, %s140
          %s143 = ssub.s32 4096, 4096
          %144 = vsyncadd %s136, %s143
          %s145 = smul.addr %s141, 128
          %s146 = scalar_lea.hbm %s1, %s145
          %s148 = sshll.u32 1, 14
          %s149 = sxor.u32 4294967295, %s148
          %s151 = sld [smem:[#allocation0]]
          %s152 = sadd.s32 2, %s151
          %s154 = sshll.u32 7, 26
          %s155 = sxor.u32 4294967295, %s154
          %s156 = sand.u32 0, %s155
          %s157 = sshll.u32 %s152, 26
          %s158 = sor.u32 %s156, %s157
          %s159 = sshll.u32 %s139, 4
          %s160 = int_to_ptr.vmem [resolvable:$true] %s159
          %166 = sst [smem:[#allocation11]] 2048
          %s167 = scalar_lea.smem [#allocation11], 1
          %168 = sst [smem:[%s167]] 1024
          %s169 = scalar_lea.smem [#allocation11], 2
          %170 = sst [smem:[%s169]] 8
          %s171 = scalar_lea.smem [#allocation11], 3
          %172 = sst [smem:[%s171]] 128
          %s173 = scalar_lea.smem [#allocation11], 4
          %174 = sst [smem:[%s173]] 128
          %s175 = scalar_lea.smem [#allocation11], 5
          %176 = sst [smem:[%s175]] 8
          %178 = dma.general %s146, 4096, %s160, %s136, 131072, [#allocation11], %s158, 0
        $region20: #{tpu_custom_call.1} parent=15 // pred_fallthru
          _
        // Predicated region
        $region21: #{tpu_custom_call.1} parent=15 // pred_check
          %p179 = pneg %p81
        $region22: #{tpu_custom_call.1} parent=15 // pred_check_branch
          %181 = sbr.rel (%p179) target = $region24
        $region23: #{tpu_custom_call.1} parent=15 // pred_region
          #allocation13 [shape = 'u32[6]{0}', space=smem, size = 0x18, scoped, tag = 'DMA stride descriptor']
          %s182 = sand.u32 %s71, 1
          %s183 = scalar_lea.sflag [#allocation8], %s182
          %s184 = sand.u32 %s71, 1
          %s185 = smul.addr %s184, 256
          %s186 = scalar_lea.vmem [#allocation7], %s185
          %s187 = sadd.s32 %s26, %s27
          %s188 = smul.u32 8, %s187
          %s190 = ssub.s32 4096, 4096
          %191 = vsyncadd %s183, %s190
          %s192 = smul.addr %s188, 128
          %s193 = scalar_lea.hbm %s2, %s192
          %s195 = sshll.u32 1, 14
          %s196 = sxor.u32 4294967295, %s195
          %s198 = sld [smem:[#allocation0]]
          %s199 = sadd.s32 2, %s198
          %s201 = sshll.u32 7, 26
          %s202 = sxor.u32 4294967295, %s201
          %s203 = sand.u32 0, %s202
          %s204 = sshll.u32 %s199, 26
          %s205 = sor.u32 %s203, %s204
          %s206 = sshll.u32 %s186, 4
          %s207 = int_to_ptr.vmem [resolvable:$true] %s206
          %213 = sst [smem:[#allocation13]] 2048
          %s214 = scalar_lea.smem [#allocation13], 1
          %215 = sst [smem:[%s214]] 1024
          %s216 = scalar_lea.smem [#allocation13], 2
          %217 = sst [smem:[%s216]] 8
          %s218 = scalar_lea.smem [#allocation13], 3
          %219 = sst [smem:[%s218]] 128
          %s220 = scalar_lea.smem [#allocation13], 4
          %221 = sst [smem:[%s220]] 128
          %s222 = scalar_lea.smem [#allocation13], 5
          %223 = sst [smem:[%s222]] 8
          %225 = dma.general %s193, 4096, %s207, %s183, 131072, [#allocation13], %s205, 0
        $region24: #{tpu_custom_call.1} parent=15 // pred_fallthru
          _
      $region16: #{tpu_custom_call.1} parent=5 // pred_fallthru
        _
      %p226 = scmp.le.s32.totalorder 1, %s19
      %p227 = scmp.lt.s32.totalorder %s19, 3
      %p228 = pnand %p226, %p227
      %p229 = pneg %p228
      // Predicated region
      $region25: #{tpu_custom_call.1} parent=5 // pred_check
        _
      $region26: #{tpu_custom_call.1} parent=5 // pred_check_branch
        %231 = sbr.rel (%p228) target = $region28
      $region27: #{tpu_custom_call.1} parent=5 // pred_region
        %s232 = ssub.s32 %s19, 1
        %s233 = sand.u32 %s46, 1
        %s234 = scalar_lea.sflag [#allocation5], %s233
        %s235 = sand.u32 %s46, 1
        %s236 = smul.addr %s235, 256
        %s237 = scalar_lea.vmem [#allocation4], %s236
        // Predicated region
        $region29: #{tpu_custom_call.1} parent=27 // pred_check
          %p238 = pneg %p59
        $region30: #{tpu_custom_call.1} parent=27 // pred_check_branch
          %240 = sbr.rel (%p238) target = $region32
        $region31: #{tpu_custom_call.1} parent=27 // pred_region
          %241 = dma.done %s234, 4096
        $region32: #{tpu_custom_call.1} parent=27 // pred_fallthru
          _
        %s242 = sand.u32 %s74, 1
        %s243 = scalar_lea.sflag [#allocation8], %s242
        %s244 = sand.u32 %s74, 1
        %s245 = smul.addr %s244, 256
        %s246 = scalar_lea.vmem [#allocation7], %s245
        // Predicated region
        $region33: #{tpu_custom_call.1} parent=27 // pred_check
          %p247 = pneg %p87
        $region34: #{tpu_custom_call.1} parent=27 // pred_check_branch
          %249 = sbr.rel (%p247) target = $region36
        $region35: #{tpu_custom_call.1} parent=27 // pred_region
          %250 = dma.done %s243, 4096
        $region36: #{tpu_custom_call.1} parent=27 // pred_fallthru
          _
        %s251 = sand.u32 %s46, 1
        %s252 = scalar_lea.sflag [#allocation5], %s251
        %s253 = sand.u32 %s46, 1
        %s254 = smul.addr %s253, 256
        %s255 = scalar_lea.vmem [#allocation4], %s254
        %p256 = pneg %p59
        %p257 = pneg %p56
        %s258 = sand.u32 %s74, 1
        %s259 = scalar_lea.sflag [#allocation8], %s258
        %s260 = sand.u32 %s74, 1
        %s261 = smul.addr %s260, 256
        %s262 = scalar_lea.vmem [#allocation7], %s261
        %p263 = pneg %p87
        %p264 = pneg %p84
        %p265 = pneg %p113
        %p266 = pneg %p110
        %s267 = sand.u32 %s100, 1
        %s268 = scalar_lea.sflag [#allocation6], %s267
        %s269 = sand.u32 %s100, 1
        %s270 = smul.addr %s269, 64
        %s271 = scalar_lea.vmem [#allocation9], %s270
        %s272 = sadd.s32 %s28, %s29
        %s273 = smul.u32 8, %s272
        %s274 = sadd.s32 %s28, %s29
        %s275 = smul.u32 8, %s274
        %s276 = sadd.s32 %s28, %s29
        %p277 = scmp.eq.s32.totalorder %s29, 0
        // Predicated region
        $region37: #{tpu_custom_call.1} parent=27 // pred_check
          %p278 = pneg %p277
        $region38: #{tpu_custom_call.1} parent=27 // pred_check_branch
          %280 = sbr.rel (%p278) target = $region40
        $region39: #{tpu_custom_call.1} parent=27 // pred_region
          %281 = vst [vmem:[%s271] sm:$0xff] 0.0
          %282 = vst [vmem:[%s271 + $0x8] sm:$0xff] 0.0
          %283 = vst [vmem:[%s271 + $0x10] sm:$0xff] 0.0
          %284 = vst [vmem:[%s271 + $0x18] sm:$0xff] 0.0
          %285 = vst [vmem:[%s271 + $0x20] sm:$0xff] 0.0
          %286 = vst [vmem:[%s271 + $0x28] sm:$0xff] 0.0
          %287 = vst [vmem:[%s271 + $0x30] sm:$0xff] 0.0
          %288 = vst [vmem:[%s271 + $0x38] sm:$0xff] 0.0
        $region40: #{tpu_custom_call.1} parent=27 // pred_fallthru
          _
        %s289 = sld [smem:[#allocation3]]
        %s290 = smul.u32 %s276, 8192
        %s291 = sadd.s32 %s290, 8192
        %p292 = scmp.le.s32.totalorder %s291, %s289
        %p293 = scmp.lt.s32.totalorder %s290, %s289
        // Predicated region
        $region41: #{tpu_custom_call.1} parent=27 // pred_check
          %p294 = pneg %p292
        $region42: #{tpu_custom_call.1} parent=27 // pred_check_branch
          %296 = sbr.rel (%p294) target = $region44
        $region43: #{tpu_custom_call.1} parent=27 // pred_region
          %v297 = vld [vmem:[%s237] sm:$0xff]
          %v298 = vld [vmem:[%s237 + $0x8] sm:$0xff]
          %v299 = vld [vmem:[%s237 + $0x10] sm:$0xff]
          %v300 = vld [vmem:[%s237 + $0x18] sm:$0xff]
          %v301 = vld [vmem:[%s237 + $0x20] sm:$0xff]
          %v302 = vld [vmem:[%s237 + $0x28] sm:$0xff]
          %v303 = vld [vmem:[%s237 + $0x30] sm:$0xff]
          %v304 = vld [vmem:[%s237 + $0x38] sm:$0xff]
          %s305 = sadd.s32 0, 64
          %s306 = scalar_lea.vmem %s237, %s305 [#allocation4]
          %v307 = vld [vmem:[%s306] sm:$0xff]
          %v308 = vld [vmem:[%s306 + $0x8] sm:$0xff]
          %v309 = vld [vmem:[%s306 + $0x10] sm:$0xff]
          %v310 = vld [vmem:[%s306 + $0x18] sm:$0xff]
          %v311 = vld [vmem:[%s306 + $0x20] sm:$0xff]
          %v312 = vld [vmem:[%s306 + $0x28] sm:$0xff]
          %v313 = vld [vmem:[%s306 + $0x30] sm:$0xff]
          %v314 = vld [vmem:[%s306 + $0x38] sm:$0xff]
          %s315 = sadd.s32 0, 128
          %s316 = scalar_lea.vmem %s237, %s315 [#allocation4]
          %v317 = vld [vmem:[%s316] sm:$0xff]
          %v318 = vld [vmem:[%s316 + $0x8] sm:$0xff]
          %v319 = vld [vmem:[%s316 + $0x10] sm:$0xff]
          %v320 = vld [vmem:[%s316 + $0x18] sm:$0xff]
          %v321 = vld [vmem:[%s316 + $0x20] sm:$0xff]
          %v322 = vld [vmem:[%s316 + $0x28] sm:$0xff]
          %v323 = vld [vmem:[%s316 + $0x30] sm:$0xff]
          %v324 = vld [vmem:[%s316 + $0x38] sm:$0xff]
          %s325 = sadd.s32 0, 192
          %s326 = scalar_lea.vmem %s237, %s325 [#allocation4]
          %v327 = vld [vmem:[%s326] sm:$0xff]
          %v328 = vld [vmem:[%s326 + $0x8] sm:$0xff]
          %v329 = vld [vmem:[%s326 + $0x10] sm:$0xff]
          %v330 = vld [vmem:[%s326 + $0x18] sm:$0xff]
          %v331 = vld [vmem:[%s326 + $0x20] sm:$0xff]
          %v332 = vld [vmem:[%s326 + $0x28] sm:$0xff]
          %v333 = vld [vmem:[%s326 + $0x30] sm:$0xff]
          %v334 = vld [vmem:[%s326 + $0x38] sm:$0xff]
          %v335 = vld [vmem:[%s246] sm:$0xff]
          %v336 = vld [vmem:[%s246 + $0x8] sm:$0xff]
          %v337 = vld [vmem:[%s246 + $0x10] sm:$0xff]
          %v338 = vld [vmem:[%s246 + $0x18] sm:$0xff]
          %v339 = vld [vmem:[%s246 + $0x20] sm:$0xff]
          %v340 = vld [vmem:[%s246 + $0x28] sm:$0xff]
          %v341 = vld [vmem:[%s246 + $0x30] sm:$0xff]
          %v342 = vld [vmem:[%s246 + $0x38] sm:$0xff]
          %s343 = scalar_lea.vmem %s246, %s305 [#allocation7]
          %v344 = vld [vmem:[%s343] sm:$0xff]
          %v345 = vld [vmem:[%s343 + $0x8] sm:$0xff]
          %v346 = vld [vmem:[%s343 + $0x10] sm:$0xff]
          %v347 = vld [vmem:[%s343 + $0x18] sm:$0xff]
          %v348 = vld [vmem:[%s343 + $0x20] sm:$0xff]
          %v349 = vld [vmem:[%s343 + $0x28] sm:$0xff]
          %v350 = vld [vmem:[%s343 + $0x30] sm:$0xff]
          %v351 = vld [vmem:[%s343 + $0x38] sm:$0xff]
          %s352 = scalar_lea.vmem %s246, %s315 [#allocation7]
          %v353 = vld [vmem:[%s352] sm:$0xff]
          %v354 = vld [vmem:[%s352 + $0x8] sm:$0xff]
          %v355 = vld [vmem:[%s352 + $0x10] sm:$0xff]
          %v356 = vld [vmem:[%s352 + $0x18] sm:$0xff]
          %v357 = vld [vmem:[%s352 + $0x20] sm:$0xff]
          %v358 = vld [vmem:[%s352 + $0x28] sm:$0xff]
          %v359 = vld [vmem:[%s352 + $0x30] sm:$0xff]
          %v360 = vld [vmem:[%s352 + $0x38] sm:$0xff]
          %s361 = scalar_lea.vmem %s246, %s325 [#allocation7]
          %v362 = vld [vmem:[%s361] sm:$0xff]
          %v363 = vld [vmem:[%s361 + $0x8] sm:$0xff]
          %v364 = vld [vmem:[%s361 + $0x10] sm:$0xff]
          %v365 = vld [vmem:[%s361 + $0x18] sm:$0xff]
          %v366 = vld [vmem:[%s361 + $0x20] sm:$0xff]
          %v367 = vld [vmem:[%s361 + $0x28] sm:$0xff]
          %v368 = vld [vmem:[%s361 + $0x30] sm:$0xff]
          %v369 = vld [vmem:[%s361 + $0x38] sm:$0xff]
          %v370 = vsub.f32 %v317, %v297
          %v371 = vsub.f32 %v318, %v298
          %v372 = vsub.f32 %v319, %v299
          %v373 = vsub.f32 %v320, %v300
          %v374 = vsub.f32 %v321, %v301
          %v375 = vsub.f32 %v322, %v302
          %v376 = vsub.f32 %v323, %v303
          %v377 = vsub.f32 %v324, %v304
          %v378 = vsub.f32 %v327, %v307
          %v379 = vsub.f32 %v328, %v308
          %v380 = vsub.f32 %v329, %v309
          %v381 = vsub.f32 %v330, %v310
          %v382 = vsub.f32 %v331, %v311
          %v383 = vsub.f32 %v332, %v312
          %v384 = vsub.f32 %v333, %v313
          %v385 = vsub.f32 %v334, %v314
          %v386 = vsub.f32 %v353, %v335
          %v387 = vsub.f32 %v354, %v336
          %v388 = vsub.f32 %v355, %v337
          %v389 = vsub.f32 %v356, %v338
          %v390 = vsub.f32 %v357, %v339
          %v391 = vsub.f32 %v358, %v340
          %v392 = vsub.f32 %v359, %v341
          %v393 = vsub.f32 %v360, %v342
          %v394 = vsub.f32 %v362, %v344
          %v395 = vsub.f32 %v363, %v345
          %v396 = vsub.f32 %v364, %v346
          %v397 = vsub.f32 %v365, %v347
          %v398 = vsub.f32 %v366, %v348
          %v399 = vsub.f32 %v367, %v349
          %v400 = vsub.f32 %v368, %v350
          %v401 = vsub.f32 %v369, %v351
          %v402 = vmin.f32 %v317, %v353
          %v403 = vmin.f32 %v318, %v354
          %v404 = vmin.f32 %v319, %v355
          %v405 = vmin.f32 %v320, %v356
          %v406 = vmin.f32 %v321, %v357
          %v407 = vmin.f32 %v322, %v358
          %v408 = vmin.f32 %v323, %v359
          %v409 = vmin.f32 %v324, %v360
          %v410 = vmax.f32 %v297, %v335
          %v411 = vmax.f32 %v298, %v336
          %v412 = vmax.f32 %v299, %v337
          %v413 = vmax.f32 %v300, %v338
          %v414 = vmax.f32 %v301, %v339
          %v415 = vmax.f32 %v302, %v340
          %v416 = vmax.f32 %v303, %v341
          %v417 = vmax.f32 %v304, %v342
          %v418 = vsub.f32 %v402, %v410
          %v419 = vsub.f32 %v403, %v411
          %v420 = vsub.f32 %v404, %v412
          %v421 = vsub.f32 %v405, %v413
          %v422 = vsub.f32 %v406, %v414
          %v423 = vsub.f32 %v407, %v415
          %v424 = vsub.f32 %v408, %v416
          %v425 = vsub.f32 %v409, %v417
          %v426 = vmax.f32 %v418, 0.0
          %v427 = vmax.f32 %v419, 0.0
          %v428 = vmax.f32 %v420, 0.0
          %v429 = vmax.f32 %v421, 0.0
          %v430 = vmax.f32 %v422, 0.0
          %v431 = vmax.f32 %v423, 0.0
          %v432 = vmax.f32 %v424, 0.0
          %v433 = vmax.f32 %v425, 0.0
          %v434 = vmin.f32 %v327, %v362
          %v435 = vmin.f32 %v328, %v363
          %v436 = vmin.f32 %v329, %v364
          %v437 = vmin.f32 %v330, %v365
          %v438 = vmin.f32 %v331, %v366
          %v439 = vmin.f32 %v332, %v367
          %v440 = vmin.f32 %v333, %v368
          %v441 = vmin.f32 %v334, %v369
          %v442 = vmax.f32 %v307, %v344
          %v443 = vmax.f32 %v308, %v345
          %v444 = vmax.f32 %v309, %v346
          %v445 = vmax.f32 %v310, %v347
          %v446 = vmax.f32 %v311, %v348
          %v447 = vmax.f32 %v312, %v349
          %v448 = vmax.f32 %v313, %v350
          %v449 = vmax.f32 %v314, %v351
          %v450 = vsub.f32 %v434, %v442
          %v451 = vsub.f32 %v435, %v443
          %v452 = vsub.f32 %v436, %v444
          %v453 = vsub.f32 %v437, %v445
          %v454 = vsub.f32 %v438, %v446
          %v455 = vsub.f32 %v439, %v447
          %v456 = vsub.f32 %v440, %v448
          %v457 = vsub.f32 %v441, %v449
          %v458 = vmax.f32 %v450, 0.0
          %v459 = vmax.f32 %v451, 0.0
          %v460 = vmax.f32 %v452, 0.0
          %v461 = vmax.f32 %v453, 0.0
          %v462 = vmax.f32 %v454, 0.0
          %v463 = vmax.f32 %v455, 0.0
          %v464 = vmax.f32 %v456, 0.0
          %v465 = vmax.f32 %v457, 0.0
          %v466 = vmul.f32 %v426, %v458
          %v467 = vmul.f32 %v427, %v459
          %v468 = vmul.f32 %v428, %v460
          %v469 = vmul.f32 %v429, %v461
          %v470 = vmul.f32 %v430, %v462
          %v471 = vmul.f32 %v431, %v463
          %v472 = vmul.f32 %v432, %v464
          %v473 = vmul.f32 %v433, %v465
          %v474 = vmul.f32 %v370, %v378
          %v475 = vmul.f32 %v371, %v379
          %v476 = vmul.f32 %v372, %v380
          %v477 = vmul.f32 %v373, %v381
          %v478 = vmul.f32 %v374, %v382
          %v479 = vmul.f32 %v375, %v383
          %v480 = vmul.f32 %v376, %v384
          %v481 = vmul.f32 %v377, %v385
          %v482 = vmul.f32 %v386, %v394
          %v483 = vmul.f32 %v387, %v395
          %v484 = vmul.f32 %v388, %v396
          %v485 = vmul.f32 %v389, %v397
          %v486 = vmul.f32 %v390, %v398
          %v487 = vmul.f32 %v391, %v399
          %v488 = vmul.f32 %v392, %v400
          %v489 = vmul.f32 %v393, %v401
          %v490 = vadd.f32 %v474, %v482
          %v491 = vadd.f32 %v475, %v483
          %v492 = vadd.f32 %v476, %v484
          %v493 = vadd.f32 %v477, %v485
          %v494 = vadd.f32 %v478, %v486
          %v495 = vadd.f32 %v479, %v487
          %v496 = vadd.f32 %v480, %v488
          %v497 = vadd.f32 %v481, %v489
          %v498 = vsub.f32 %v490, %v466
          %v499 = vsub.f32 %v491, %v467
          %v500 = vsub.f32 %v492, %v468
          %v501 = vsub.f32 %v493, %v469
          %v502 = vsub.f32 %v494, %v470
          %v503 = vsub.f32 %v495, %v471
          %v504 = vsub.f32 %v496, %v472
          %v505 = vsub.f32 %v497, %v473
          %v506 = vadd.f32 %v498, 1e-06
          %v507 = vadd.f32 %v499, 1e-06
          %v508 = vadd.f32 %v500, 1e-06
          %v509 = vadd.f32 %v501, 1e-06
          %v510 = vadd.f32 %v502, 1e-06
          %v511 = vadd.f32 %v503, 1e-06
          %v512 = vadd.f32 %v504, 1e-06
          %v513 = vadd.f32 %v505, 1e-06
          %v514 = vrcp.pop %v506
          %v515 = vmul.f32 %v466, %v514
          %v516 = vrcp.pop %v507
          %v517 = vmul.f32 %v467, %v516
          %v518 = vrcp.pop %v508
          %v519 = vmul.f32 %v468, %v518
          %v520 = vrcp.pop %v509
          %v521 = vmul.f32 %v469, %v520
          %v522 = vrcp.pop %v510
          %v523 = vmul.f32 %v470, %v522
          %v524 = vrcp.pop %v511
          %v525 = vmul.f32 %v471, %v524
          %v526 = vrcp.pop %v512
          %v527 = vmul.f32 %v472, %v526
          %v528 = vrcp.pop %v513
          %v529 = vmul.f32 %v473, %v528
          %v530 = vsub.f32 1.0, %v515
          %v531 = vsub.f32 1.0, %v517
          %v532 = vsub.f32 1.0, %v519
          %v533 = vsub.f32 1.0, %v521
          %v534 = vsub.f32 1.0, %v523
          %v535 = vsub.f32 1.0, %v525
          %v536 = vsub.f32 1.0, %v527
          %v537 = vsub.f32 1.0, %v529
          %v538 = vmax.f32 %v317, %v353
          %v539 = vmax.f32 %v318, %v354
          %v540 = vmax.f32 %v319, %v355
          %v541 = vmax.f32 %v320, %v356
          %v542 = vmax.f32 %v321, %v357
          %v543 = vmax.f32 %v322, %v358
          %v544 = vmax.f32 %v323, %v359
          %v545 = vmax.f32 %v324, %v360
          %v546 = vmin.f32 %v297, %v335
          %v547 = vmin.f32 %v298, %v336
          %v548 = vmin.f32 %v299, %v337
          %v549 = vmin.f32 %v300, %v338
          %v550 = vmin.f32 %v301, %v339
          %v551 = vmin.f32 %v302, %v340
          %v552 = vmin.f32 %v303, %v341
          %v553 = vmin.f32 %v304, %v342
          %v554 = vsub.f32 %v538, %v546
          %v555 = vsub.f32 %v539, %v547
          %v556 = vsub.f32 %v540, %v548
          %v557 = vsub.f32 %v541, %v549
          %v558 = vsub.f32 %v542, %v550
          %v559 = vsub.f32 %v543, %v551
          %v560 = vsub.f32 %v544, %v552
          %v561 = vsub.f32 %v545, %v553
          %v562 = vmax.f32 %v554, 0.0
          %v563 = vmax.f32 %v555, 0.0
          %v564 = vmax.f32 %v556, 0.0
          %v565 = vmax.f32 %v557, 0.0
          %v566 = vmax.f32 %v558, 0.0
          %v567 = vmax.f32 %v559, 0.0
          %v568 = vmax.f32 %v560, 0.0
          %v569 = vmax.f32 %v561, 0.0
          %v570 = vmax.f32 %v327, %v362
          %v571 = vmax.f32 %v328, %v363
          %v572 = vmax.f32 %v329, %v364
          %v573 = vmax.f32 %v330, %v365
          %v574 = vmax.f32 %v331, %v366
          %v575 = vmax.f32 %v332, %v367
          %v576 = vmax.f32 %v333, %v368
          %v577 = vmax.f32 %v334, %v369
          %v578 = vmin.f32 %v307, %v344
          %v579 = vmin.f32 %v308, %v345
          %v580 = vmin.f32 %v309, %v346
          %v581 = vmin.f32 %v310, %v347
          %v582 = vmin.f32 %v311, %v348
          %v583 = vmin.f32 %v312, %v349
          %v584 = vmin.f32 %v313, %v350
          %v585 = vmin.f32 %v314, %v351
          %v586 = vsub.f32 %v570, %v578
          %v587 = vsub.f32 %v571, %v579
          %v588 = vsub.f32 %v572, %v580
          %v589 = vsub.f32 %v573, %v581
          %v590 = vsub.f32 %v574, %v582
          %v591 = vsub.f32 %v575, %v583
          %v592 = vsub.f32 %v576, %v584
          %v593 = vsub.f32 %v577, %v585
          %v594 = vmax.f32 %v586, 0.0
          %v595 = vmax.f32 %v587, 0.0
          %v596 = vmax.f32 %v588, 0.0
          %v597 = vmax.f32 %v589, 0.0
          %v598 = vmax.f32 %v590, 0.0
          %v599 = vmax.f32 %v591, 0.0
          %v600 = vmax.f32 %v592, 0.0
          %v601 = vmax.f32 %v593, 0.0
          %v602 = vmul.f32 %v562, %v562
          %v603 = vmul.f32 %v563, %v563
          %v604 = vmul.f32 %v564, %v564
          %v605 = vmul.f32 %v565, %v565
          %v606 = vmul.f32 %v566, %v566
          %v607 = vmul.f32 %v567, %v567
          %v608 = vmul.f32 %v568, %v568
          %v609 = vmul.f32 %v569, %v569
          %v610 = vmul.f32 %v594, %v594
          %v611 = vmul.f32 %v595, %v595
          %v612 = vmul.f32 %v596, %v596
          %v613 = vmul.f32 %v597, %v597
          %v614 = vmul.f32 %v598, %v598
          %v615 = vmul.f32 %v599, %v599
          %v616 = vmul.f32 %v600, %v600
          %v617 = vmul.f32 %v601, %v601
          %v618 = vadd.f32 %v602, %v610
          %v619 = vadd.f32 %v603, %v611
          %v620 = vadd.f32 %v604, %v612
          %v621 = vadd.f32 %v605, %v613
          %v622 = vadd.f32 %v606, %v614
          %v623 = vadd.f32 %v607, %v615
          %v624 = vadd.f32 %v608, %v616
          %v625 = vadd.f32 %v609, %v617
          %v626 = vadd.f32 %v618, 1e-06
          %v627 = vadd.f32 %v619, 1e-06
          %v628 = vadd.f32 %v620, 1e-06
          %v629 = vadd.f32 %v621, 1e-06
          %v630 = vadd.f32 %v622, 1e-06
          %v631 = vadd.f32 %v623, 1e-06
          %v632 = vadd.f32 %v624, 1e-06
          %v633 = vadd.f32 %v625, 1e-06
          %v634 = vadd.f32 %v335, %v353
          %v635 = vadd.f32 %v336, %v354
          %v636 = vadd.f32 %v337, %v355
          %v637 = vadd.f32 %v338, %v356
          %v638 = vadd.f32 %v339, %v357
          %v639 = vadd.f32 %v340, %v358
          %v640 = vadd.f32 %v341, %v359
          %v641 = vadd.f32 %v342, %v360
          %v642 = vadd.f32 %v297, %v317
          %v643 = vadd.f32 %v298, %v318
          %v644 = vadd.f32 %v299, %v319
          %v645 = vadd.f32 %v300, %v320
          %v646 = vadd.f32 %v301, %v321
          %v647 = vadd.f32 %v302, %v322
          %v648 = vadd.f32 %v303, %v323
          %v649 = vadd.f32 %v304, %v324
          %v650 = vsub.f32 %v634, %v642
          %v651 = vsub.f32 %v635, %v643
          %v652 = vsub.f32 %v636, %v644
          %v653 = vsub.f32 %v637, %v645
          %v654 = vsub.f32 %v638, %v646
          %v655 = vsub.f32 %v639, %v647
          %v656 = vsub.f32 %v640, %v648
          %v657 = vsub.f32 %v641, %v649
          %v658 = vadd.f32 %v344, %v362
          %v659 = vadd.f32 %v345, %v363
          %v660 = vadd.f32 %v346, %v364
          %v661 = vadd.f32 %v347, %v365
          %v662 = vadd.f32 %v348, %v366
          %v663 = vadd.f32 %v349, %v367
          %v664 = vadd.f32 %v350, %v368
          %v665 = vadd.f32 %v351, %v369
          %v666 = vadd.f32 %v307, %v327
          %v667 = vadd.f32 %v308, %v328
          %v668 = vadd.f32 %v309, %v329
          %v669 = vadd.f32 %v310, %v330
          %v670 = vadd.f32 %v311, %v331
          %v671 = vadd.f32 %v312, %v332
          %v672 = vadd.f32 %v313, %v333
          %v673 = vadd.f32 %v314, %v334
          %v674 = vsub.f32 %v658, %v666
          %v675 = vsub.f32 %v659, %v667
          %v676 = vsub.f32 %v660, %v668
          %v677 = vsub.f32 %v661, %v669
          %v678 = vsub.f32 %v662, %v670
          %v679 = vsub.f32 %v663, %v671
          %v680 = vsub.f32 %v664, %v672
          %v681 = vsub.f32 %v665, %v673
          %v682 = vmul.f32 %v650, %v650
          %v683 = vmul.f32 %v651, %v651
          %v684 = vmul.f32 %v652, %v652
          %v685 = vmul.f32 %v653, %v653
          %v686 = vmul.f32 %v654, %v654
          %v687 = vmul.f32 %v655, %v655
          %v688 = vmul.f32 %v656, %v656
          %v689 = vmul.f32 %v657, %v657
          %v690 = vmul.f32 %v674, %v674
          %v691 = vmul.f32 %v675, %v675
          %v692 = vmul.f32 %v676, %v676
          %v693 = vmul.f32 %v677, %v677
          %v694 = vmul.f32 %v678, %v678
          %v695 = vmul.f32 %v679, %v679
          %v696 = vmul.f32 %v680, %v680
          %v697 = vmul.f32 %v681, %v681
          %v698 = vadd.f32 %v682, %v690
          %v699 = vadd.f32 %v683, %v691
          %v700 = vadd.f32 %v684, %v692
          %v701 = vadd.f32 %v685, %v693
          %v702 = vadd.f32 %v686, %v694
          %v703 = vadd.f32 %v687, %v695
          %v704 = vadd.f32 %v688, %v696
          %v705 = vadd.f32 %v689, %v697
          %v706 = vmul.f32 %v698, 0.25
          %v707 = vmul.f32 %v699, 0.25
          %v708 = vmul.f32 %v700, 0.25
          %v709 = vmul.f32 %v701, 0.25
          %v710 = vmul.f32 %v702, 0.25
          %v711 = vmul.f32 %v703, 0.25
          %v712 = vmul.f32 %v704, 0.25
          %v713 = vmul.f32 %v705, 0.25
          %v714 = vrcp.pop %v626
          %v715 = vrcp.pop %v627
          %v716 = vrcp.pop %v628
          %v717 = vrcp.pop %v629
          %v718 = vrcp.pop %v630
          %v719 = vrcp.pop %v631
          %v720 = vrcp.pop %v632
          %v721 = vrcp.pop %v633
          %v722 = vmul.f32 %v626, %v714
          %v723 = vmul.f32 %v627, %v715
          %v724 = vmul.f32 %v628, %v716
          %v725 = vmul.f32 %v629, %v717
          %v726 = vmul.f32 %v630, %v718
          %v727 = vmul.f32 %v631, %v719
          %v728 = vmul.f32 %v632, %v720
          %v729 = vmul.f32 %v633, %v721
          %v730 = vsub.f32 2.0, %v722
          %v731 = vsub.f32 2.0, %v723
          %v732 = vsub.f32 2.0, %v724
          %v733 = vsub.f32 2.0, %v725
          %v734 = vsub.f32 2.0, %v726
          %v735 = vsub.f32 2.0, %v727
          %v736 = vsub.f32 2.0, %v728
          %v737 = vsub.f32 2.0, %v729
          %v738 = vmul.f32 %v714, %v730
          %v739 = vmul.f32 %v715, %v731
          %v740 = vmul.f32 %v716, %v732
          %v741 = vmul.f32 %v717, %v733
          %v742 = vmul.f32 %v718, %v734
          %v743 = vmul.f32 %v719, %v735
          %v744 = vmul.f32 %v720, %v736
          %v745 = vmul.f32 %v721, %v737
          %v746 = vmul.f32 %v706, %v738
          %v747 = vmul.f32 %v707, %v739
          %v748 = vmul.f32 %v708, %v740
          %v749 = vmul.f32 %v709, %v741
          %v750 = vmul.f32 %v710, %v742
          %v751 = vmul.f32 %v711, %v743
          %v752 = vmul.f32 %v712, %v744
          %v753 = vmul.f32 %v713, %v745
          %v754 = vadd.f32 %v378, 1e-06
          %v755 = vadd.f32 %v379, 1e-06
          %v756 = vadd.f32 %v380, 1e-06
          %v757 = vadd.f32 %v381, 1e-06
          %v758 = vadd.f32 %v382, 1e-06
          %v759 = vadd.f32 %v383, 1e-06
          %v760 = vadd.f32 %v384, 1e-06
          %v761 = vadd.f32 %v385, 1e-06
          %v762 = vadd.f32 %v394, 1e-06
          %v763 = vadd.f32 %v395, 1e-06
          %v764 = vadd.f32 %v396, 1e-06
          %v765 = vadd.f32 %v397, 1e-06
          %v766 = vadd.f32 %v398, 1e-06
          %v767 = vadd.f32 %v399, 1e-06
          %v768 = vadd.f32 %v400, 1e-06
          %v769 = vadd.f32 %v401, 1e-06
          %v770 = vmul.f32 %v754, %v762
          %v771 = vmul.f32 %v755, %v763
          %v772 = vmul.f32 %v756, %v764
          %v773 = vmul.f32 %v757, %v765
          %v774 = vmul.f32 %v758, %v766
          %v775 = vmul.f32 %v759, %v767
          %v776 = vmul.f32 %v760, %v768
          %v777 = vmul.f32 %v761, %v769
          %v778 = vmul.f32 %v386, %v754
          %v779 = vmul.f32 %v387, %v755
          %v780 = vmul.f32 %v388, %v756
          %v781 = vmul.f32 %v389, %v757
          %v782 = vmul.f32 %v390, %v758
          %v783 = vmul.f32 %v391, %v759
          %v784 = vmul.f32 %v392, %v760
          %v785 = vmul.f32 %v393, %v761
          %v786 = vmul.f32 %v370, %v762
          %v787 = vmul.f32 %v371, %v763
          %v788 = vmul.f32 %v372, %v764
          %v789 = vmul.f32 %v373, %v765
          %v790 = vmul.f32 %v374, %v766
          %v791 = vmul.f32 %v375, %v767
          %v792 = vmul.f32 %v376, %v768
          %v793 = vmul.f32 %v377, %v769
          %v794 = vsub.f32 %v778, %v786
          %v795 = vsub.f32 %v779, %v787
          %v796 = vsub.f32 %v780, %v788
          %v797 = vsub.f32 %v781, %v789
          %v798 = vsub.f32 %v782, %v790
          %v799 = vsub.f32 %v783, %v791
          %v800 = vsub.f32 %v784, %v792
          %v801 = vsub.f32 %v785, %v793
          %v802 = vmul.f32 %v370, %v386
          %v803 = vmul.f32 %v371, %v387
          %v804 = vmul.f32 %v372, %v388
          %v805 = vmul.f32 %v373, %v389
          %v806 = vmul.f32 %v374, %v390
          %v807 = vmul.f32 %v375, %v391
          %v808 = vmul.f32 %v376, %v392
          %v809 = vmul.f32 %v377, %v393
          %v810 = vadd.f32 %v770, %v802
          %v811 = vadd.f32 %v771, %v803
          %v812 = vadd.f32 %v772, %v804
          %v813 = vadd.f32 %v773, %v805
          %v814 = vadd.f32 %v774, %v806
          %v815 = vadd.f32 %v775, %v807
          %v816 = vadd.f32 %v776, %v808
          %v817 = vadd.f32 %v777, %v809
          %v818 = vrcp.pop %v810
          %v819 = vrcp.pop %v811
          %v820 = vrcp.pop %v812
          %v821 = vrcp.pop %v813
          %v822 = vrcp.pop %v814
          %v823 = vrcp.pop %v815
          %v824 = vrcp.pop %v816
          %v825 = vrcp.pop %v817
          %v826 = vmul.f32 %v810, %v818
          %v827 = vmul.f32 %v811, %v819
          %v828 = vmul.f32 %v812, %v820
          %v829 = vmul.f32 %v813, %v821
          %v830 = vmul.f32 %v814, %v822
          %v831 = vmul.f32 %v815, %v823
          %v832 = vmul.f32 %v816, %v824
          %v833 = vmul.f32 %v817, %v825
          %v834 = vsub.f32 2.0, %v826
          %v835 = vsub.f32 2.0, %v827
          %v836 = vsub.f32 2.0, %v828
          %v837 = vsub.f32 2.0, %v829
          %v838 = vsub.f32 2.0, %v830
          %v839 = vsub.f32 2.0, %v831
          %v840 = vsub.f32 2.0, %v832
          %v841 = vsub.f32 2.0, %v833
          %v842 = vmul.f32 %v818, %v834
          %v843 = vmul.f32 %v819, %v835
          %v844 = vmul.f32 %v820, %v836
          %v845 = vmul.f32 %v821, %v837
          %v846 = vmul.f32 %v822, %v838
          %v847 = vmul.f32 %v823, %v839
          %v848 = vmul.f32 %v824, %v840
          %v849 = vmul.f32 %v825, %v841
          %v850 = vmul.f32 %v794, %v842
          %v851 = vmul.f32 %v795, %v843
          %v852 = vmul.f32 %v796, %v844
          %v853 = vmul.f32 %v797, %v845
          %v854 = vmul.f32 %v798, %v846
          %v855 = vmul.f32 %v799, %v847
          %v856 = vmul.f32 %v800, %v848
          %v857 = vmul.f32 %v801, %v849
          %vm858 = vcmp.lt.f32.partialorder %v850, 0.0
          %vm859 = vcmp.lt.f32.partialorder %v851, 0.0
          %vm860 = vcmp.lt.f32.partialorder %v852, 0.0
          %vm861 = vcmp.lt.f32.partialorder %v853, 0.0
          %vm862 = vcmp.lt.f32.partialorder %v854, 0.0
          %vm863 = vcmp.lt.f32.partialorder %v855, 0.0
          %vm864 = vcmp.lt.f32.partialorder %v856, 0.0
          %vm865 = vcmp.lt.f32.partialorder %v857, 0.0
          %v866 = vsel %vm858, -1.0, 1.0
          %v867 = vsel %vm859, -1.0, 1.0
          %v868 = vsel %vm860, -1.0, 1.0
          %v869 = vsel %vm861, -1.0, 1.0
          %v870 = vsel %vm862, -1.0, 1.0
          %v871 = vsel %vm863, -1.0, 1.0
          %v872 = vsel %vm864, -1.0, 1.0
          %v873 = vsel %vm865, -1.0, 1.0
          %v874 = vand.u32 2147483647, %v850
          %v875 = vand.u32 2147483647, %v851
          %v876 = vand.u32 2147483647, %v852
          %v877 = vand.u32 2147483647, %v853
          %v878 = vand.u32 2147483647, %v854
          %v879 = vand.u32 2147483647, %v855
          %v880 = vand.u32 2147483647, %v856
          %v881 = vand.u32 2147483647, %v857
          %vm882 = vcmp.gt.f32.partialorder %v874, 2.4142137
          %vm883 = vcmp.gt.f32.partialorder %v875, 2.4142137
          %vm884 = vcmp.gt.f32.partialorder %v876, 2.4142137
          %vm885 = vcmp.gt.f32.partialorder %v877, 2.4142137
          %vm886 = vcmp.gt.f32.partialorder %v878, 2.4142137
          %vm887 = vcmp.gt.f32.partialorder %v879, 2.4142137
          %vm888 = vcmp.gt.f32.partialorder %v880, 2.4142137
          %vm889 = vcmp.gt.f32.partialorder %v881, 2.4142137
          %vm890 = vmxor %vm882, 1
          %vm891 = vmxor %vm883, 1
          %vm892 = vmxor %vm884, 1
          %vm893 = vmxor %vm885, 1
          %vm894 = vmxor %vm886, 1
          %vm895 = vmxor %vm887, 1
          %vm896 = vmxor %vm888, 1
          %vm897 = vmxor %vm889, 1
          %vm898 = vcmp.gt.f32.partialorder %v874, 0.41421357
          %vm899 = vcmp.gt.f32.partialorder %v875, 0.41421357
          %vm900 = vcmp.gt.f32.partialorder %v876, 0.41421357
          %vm901 = vcmp.gt.f32.partialorder %v877, 0.41421357
          %vm902 = vcmp.gt.f32.partialorder %v878, 0.41421357
          %vm903 = vcmp.gt.f32.partialorder %v879, 0.41421357
          %vm904 = vcmp.gt.f32.partialorder %v880, 0.41421357
          %vm905 = vcmp.gt.f32.partialorder %v881, 0.41421357
          %vm906 = vmand %vm890, %vm898
          %vm907 = vmand %vm891, %vm899
          %vm908 = vmand %vm892, %vm900
          %vm909 = vmand %vm893, %vm901
          %vm910 = vmand %vm894, %vm902
          %vm911 = vmand %vm895, %vm903
          %vm912 = vmand %vm896, %vm904
          %vm913 = vmand %vm897, %vm905
          %v914 = vsub.f32 %v874, 1.0
          %v915 = vsub.f32 %v875, 1.0
          %v916 = vsub.f32 %v876, 1.0
          %v917 = vsub.f32 %v877, 1.0
          %v918 = vsub.f32 %v878, 1.0
          %v919 = vsub.f32 %v879, 1.0
          %v920 = vsub.f32 %v880, 1.0
          %v921 = vsub.f32 %v881, 1.0
          %v922 = vsel %vm906, %v914, %v874
          %v923 = vsel %vm907, %v915, %v875
          %v924 = vsel %vm908, %v916, %v876
          %v925 = vsel %vm909, %v917, %v877
          %v926 = vsel %vm910, %v918, %v878
          %v927 = vsel %vm911, %v919, %v879
          %v928 = vsel %vm912, %v920, %v880
          %v929 = vsel %vm913, %v921, %v881
          %v930 = vsel %vm882, -1.0, %v922
          %v931 = vsel %vm883, -1.0, %v923
          %v932 = vsel %vm884, -1.0, %v924
          %v933 = vsel %vm885, -1.0, %v925
          %v934 = vsel %vm886, -1.0, %v926
          %v935 = vsel %vm887, -1.0, %v927
          %v936 = vsel %vm888, -1.0, %v928
          %v937 = vsel %vm889, -1.0, %v929
          %v938 = vadd.f32 %v874, 1.0
          %v939 = vadd.f32 %v875, 1.0
          %v940 = vadd.f32 %v876, 1.0
          %v941 = vadd.f32 %v877, 1.0
          %v942 = vadd.f32 %v878, 1.0
          %v943 = vadd.f32 %v879, 1.0
          %v944 = vadd.f32 %v880, 1.0
          %v945 = vadd.f32 %v881, 1.0
          %v946 = vsel %vm906, %v938, 1.0
          %v947 = vsel %vm907, %v939, 1.0
          %v948 = vsel %vm908, %v940, 1.0
          %v949 = vsel %vm909, %v941, 1.0
          %v950 = vsel %vm910, %v942, 1.0
          %v951 = vsel %vm911, %v943, 1.0
          %v952 = vsel %vm912, %v944, 1.0
          %v953 = vsel %vm913, %v945, 1.0
          %v954 = vsel %vm882, %v874, %v946
          %v955 = vsel %vm883, %v875, %v947
          %v956 = vsel %vm884, %v876, %v948
          %v957 = vsel %vm885, %v877, %v949
          %v958 = vsel %vm886, %v878, %v950
          %v959 = vsel %vm887, %v879, %v951
          %v960 = vsel %vm888, %v880, %v952
          %v961 = vsel %vm889, %v881, %v953
          %v962 = vrcp.pop %v954
          %v963 = vrcp.pop %v955
          %v964 = vrcp.pop %v956
          %v965 = vrcp.pop %v957
          %v966 = vrcp.pop %v958
          %v967 = vrcp.pop %v959
          %v968 = vrcp.pop %v960
          %v969 = vrcp.pop %v961
          %v970 = vmul.f32 %v954, %v962
          %v971 = vmul.f32 %v955, %v963
          %v972 = vmul.f32 %v956, %v964
          %v973 = vmul.f32 %v957, %v965
          %v974 = vmul.f32 %v958, %v966
          %v975 = vmul.f32 %v959, %v967
          %v976 = vmul.f32 %v960, %v968
          %v977 = vmul.f32 %v961, %v969
          %v978 = vsub.f32 2.0, %v970
          %v979 = vsub.f32 2.0, %v971
          %v980 = vsub.f32 2.0, %v972
          %v981 = vsub.f32 2.0, %v973
          %v982 = vsub.f32 2.0, %v974
          %v983 = vsub.f32 2.0, %v975
          %v984 = vsub.f32 2.0, %v976
          %v985 = vsub.f32 2.0, %v977
          %v986 = vmul.f32 %v962, %v978
          %v987 = vmul.f32 %v963, %v979
          %v988 = vmul.f32 %v964, %v980
          %v989 = vmul.f32 %v965, %v981
          %v990 = vmul.f32 %v966, %v982
          %v991 = vmul.f32 %v967, %v983
          %v992 = vmul.f32 %v968, %v984
          %v993 = vmul.f32 %v969, %v985
          %v994 = vmul.f32 %v930, %v986
          %v995 = vmul.f32 %v931, %v987
          %v996 = vmul.f32 %v932, %v988
          %v997 = vmul.f32 %v933, %v989
          %v998 = vmul.f32 %v934, %v990
          %v999 = vmul.f32 %v935, %v991
          %v1000 = vmul.f32 %v936, %v992
          %v1001 = vmul.f32 %v937, %v993
          %v1002 = vsel %vm906, 0.7853982, 0.0
          %v1003 = vsel %vm907, 0.7853982, 0.0
          %v1004 = vsel %vm908, 0.7853982, 0.0
          %v1005 = vsel %vm909, 0.7853982, 0.0
          %v1006 = vsel %vm910, 0.7853982, 0.0
          %v1007 = vsel %vm911, 0.7853982, 0.0
          %v1008 = vsel %vm912, 0.7853982, 0.0
          %v1009 = vsel %vm913, 0.7853982, 0.0
          %v1010 = vsel %vm882, 1.5707964, %v1002
          %v1011 = vsel %vm883, 1.5707964, %v1003
          %v1012 = vsel %vm884, 1.5707964, %v1004
          %v1013 = vsel %vm885, 1.5707964, %v1005
          %v1014 = vsel %vm886, 1.5707964, %v1006
          %v1015 = vsel %vm887, 1.5707964, %v1007
          %v1016 = vsel %vm888, 1.5707964, %v1008
          %v1017 = vsel %vm889, 1.5707964, %v1009
          %v1018 = vmul.f32 %v994, %v994
          %v1019 = vmul.f32 %v995, %v995
          %v1020 = vmul.f32 %v996, %v996
          %v1021 = vmul.f32 %v997, %v997
          %v1022 = vmul.f32 %v998, %v998
          %v1023 = vmul.f32 %v999, %v999
          %v1024 = vmul.f32 %v1000, %v1000
          %v1025 = vmul.f32 %v1001, %v1001
          %v1026 = vmul.f32 %v1018, 0.080537446
          %v1027 = vmul.f32 %v1019, 0.080537446
          %v1028 = vmul.f32 %v1020, 0.080537446
          %v1029 = vmul.f32 %v1021, 0.080537446
          %v1030 = vmul.f32 %v1022, 0.080537446
          %v1031 = vmul.f32 %v1023, 0.080537446
          %v1032 = vmul.f32 %v1024, 0.080537446
          %v1033 = vmul.f32 %v1025, 0.080537446
          %v1034 = vsub.f32 %v1026, 0.13877685
          %v1035 = vsub.f32 %v1027, 0.13877685
          %v1036 = vsub.f32 %v1028, 0.13877685
          %v1037 = vsub.f32 %v1029, 0.13877685
          %v1038 = vsub.f32 %v1030, 0.13877685
          %v1039 = vsub.f32 %v1031, 0.13877685
          %v1040 = vsub.f32 %v1032, 0.13877685
          %v1041 = vsub.f32 %v1033, 0.13877685
          %v1042 = vmul.f32 %v1034, %v1018
          %v1043 = vmul.f32 %v1035, %v1019
          %v1044 = vmul.f32 %v1036, %v1020
          %v1045 = vmul.f32 %v1037, %v1021
          %v1046 = vmul.f32 %v1038, %v1022
          %v1047 = vmul.f32 %v1039, %v1023
          %v1048 = vmul.f32 %v1040, %v1024
          %v1049 = vmul.f32 %v1041, %v1025
          %v1050 = vadd.f32 %v1042, 0.19977711
          %v1051 = vadd.f32 %v1043, 0.19977711
          %v1052 = vadd.f32 %v1044, 0.19977711
          %v1053 = vadd.f32 %v1045, 0.19977711
          %v1054 = vadd.f32 %v1046, 0.19977711
          %v1055 = vadd.f32 %v1047, 0.19977711
          %v1056 = vadd.f32 %v1048, 0.19977711
          %v1057 = vadd.f32 %v1049, 0.19977711
          %v1058 = vmul.f32 %v1050, %v1018
          %v1059 = vmul.f32 %v1051, %v1019
          %v1060 = vmul.f32 %v1052, %v1020
          %v1061 = vmul.f32 %v1053, %v1021
          %v1062 = vmul.f32 %v1054, %v1022
          %v1063 = vmul.f32 %v1055, %v1023
          %v1064 = vmul.f32 %v1056, %v1024
          %v1065 = vmul.f32 %v1057, %v1025
          %v1066 = vsub.f32 %v1058, 0.3333295
          %v1067 = vsub.f32 %v1059, 0.3333295
          %v1068 = vsub.f32 %v1060, 0.3333295
          %v1069 = vsub.f32 %v1061, 0.3333295
          %v1070 = vsub.f32 %v1062, 0.3333295
          %v1071 = vsub.f32 %v1063, 0.3333295
          %v1072 = vsub.f32 %v1064, 0.3333295
          %v1073 = vsub.f32 %v1065, 0.3333295
          %v1074 = vmul.f32 %v1066, %v1018
          %v1075 = vmul.f32 %v1067, %v1019
          %v1076 = vmul.f32 %v1068, %v1020
          %v1077 = vmul.f32 %v1069, %v1021
          %v1078 = vmul.f32 %v1070, %v1022
          %v1079 = vmul.f32 %v1071, %v1023
          %v1080 = vmul.f32 %v1072, %v1024
          %v1081 = vmul.f32 %v1073, %v1025
          %v1082 = vmul.f32 %v1074, %v994
          %v1083 = vmul.f32 %v1075, %v995
          %v1084 = vmul.f32 %v1076, %v996
          %v1085 = vmul.f32 %v1077, %v997
          %v1086 = vmul.f32 %v1078, %v998
          %v1087 = vmul.f32 %v1079, %v999
          %v1088 = vmul.f32 %v1080, %v1000
          %v1089 = vmul.f32 %v1081, %v1001
          %v1090 = vadd.f32 %v1010, %v1082
          %v1091 = vadd.f32 %v1011, %v1083
          %v1092 = vadd.f32 %v1012, %v1084
          %v1093 = vadd.f32 %v1013, %v1085
          %v1094 = vadd.f32 %v1014, %v1086
          %v1095 = vadd.f32 %v1015, %v1087
          %v1096 = vadd.f32 %v1016, %v1088
          %v1097 = vadd.f32 %v1017, %v1089
          %v1098 = vadd.f32 %v1090, %v994
          %v1099 = vadd.f32 %v1091, %v995
          %v1100 = vadd.f32 %v1092, %v996
          %v1101 = vadd.f32 %v1093, %v997
          %v1102 = vadd.f32 %v1094, %v998
          %v1103 = vadd.f32 %v1095, %v999
          %v1104 = vadd.f32 %v1096, %v1000
          %v1105 = vadd.f32 %v1097, %v1001
          %v1106 = vmul.f32 %v866, %v1098
          %v1107 = vmul.f32 %v867, %v1099
          %v1108 = vmul.f32 %v868, %v1100
          %v1109 = vmul.f32 %v869, %v1101
          %v1110 = vmul.f32 %v870, %v1102
          %v1111 = vmul.f32 %v871, %v1103
          %v1112 = vmul.f32 %v872, %v1104
          %v1113 = vmul.f32 %v873, %v1105
          %v1114 = vmul.f32 %v810, %v770
          %v1115 = vmul.f32 %v811, %v771
          %v1116 = vmul.f32 %v812, %v772
          %v1117 = vmul.f32 %v813, %v773
          %v1118 = vmul.f32 %v814, %v774
          %v1119 = vmul.f32 %v815, %v775
          %v1120 = vmul.f32 %v816, %v776
          %v1121 = vmul.f32 %v817, %v777
          %vm1122 = vcmp.lt.f32.partialorder %v1114, 0.0
          %vm1123 = vcmp.lt.f32.partialorder %v1115, 0.0
          %vm1124 = vcmp.lt.f32.partialorder %v1116, 0.0
          %vm1125 = vcmp.lt.f32.partialorder %v1117, 0.0
          %vm1126 = vcmp.lt.f32.partialorder %v1118, 0.0
          %vm1127 = vcmp.lt.f32.partialorder %v1119, 0.0
          %vm1128 = vcmp.lt.f32.partialorder %v1120, 0.0
          %vm1129 = vcmp.lt.f32.partialorder %v1121, 0.0
          %v1130 = vmul.f32 %v386, %v762
          %v1131 = vmul.f32 %v387, %v763
          %v1132 = vmul.f32 %v388, %v764
          %v1133 = vmul.f32 %v389, %v765
          %v1134 = vmul.f32 %v390, %v766
          %v1135 = vmul.f32 %v391, %v767
          %v1136 = vmul.f32 %v392, %v768
          %v1137 = vmul.f32 %v393, %v769
          %vm1138 = vcmp.gt.f32.partialorder %v1130, 0.0
          %vm1139 = vcmp.gt.f32.partialorder %v1131, 0.0
          %vm1140 = vcmp.gt.f32.partialorder %v1132, 0.0
          %vm1141 = vcmp.gt.f32.partialorder %v1133, 0.0
          %vm1142 = vcmp.gt.f32.partialorder %v1134, 0.0
          %vm1143 = vcmp.gt.f32.partialorder %v1135, 0.0
          %vm1144 = vcmp.gt.f32.partialorder %v1136, 0.0
          %vm1145 = vcmp.gt.f32.partialorder %v1137, 0.0
          %v1146 = vsel %vm1138, 3.1415927, -3.1415927
          %v1147 = vsel %vm1139, 3.1415927, -3.1415927
          %v1148 = vsel %vm1140, 3.1415927, -3.1415927
          %v1149 = vsel %vm1141, 3.1415927, -3.1415927
          %v1150 = vsel %vm1142, 3.1415927, -3.1415927
          %v1151 = vsel %vm1143, 3.1415927, -3.1415927
          %v1152 = vsel %vm1144, 3.1415927, -3.1415927
          %v1153 = vsel %vm1145, 3.1415927, -3.1415927
          %v1154 = vsel %vm1122, %v1146, 0.0
          %v1155 = vsel %vm1123, %v1147, 0.0
          %v1156 = vsel %vm1124, %v1148, 0.0
          %v1157 = vsel %vm1125, %v1149, 0.0
          %v1158 = vsel %vm1126, %v1150, 0.0
          %v1159 = vsel %vm1127, %v1151, 0.0
          %v1160 = vsel %vm1128, %v1152, 0.0
          %v1161 = vsel %vm1129, %v1153, 0.0
          %v1162 = vadd.f32 %v1106, %v1154
          %v1163 = vadd.f32 %v1107, %v1155
          %v1164 = vadd.f32 %v1108, %v1156
          %v1165 = vadd.f32 %v1109, %v1157
          %v1166 = vadd.f32 %v1110, %v1158
          %v1167 = vadd.f32 %v1111, %v1159
          %v1168 = vadd.f32 %v1112, %v1160
          %v1169 = vadd.f32 %v1113, %v1161
          %v1170 = vmul.f32 %v1162, 0.40528473
          %v1171 = vmul.f32 %v1163, 0.40528473
          %v1172 = vmul.f32 %v1164, 0.40528473
          %v1173 = vmul.f32 %v1165, 0.40528473
          %v1174 = vmul.f32 %v1166, 0.40528473
          %v1175 = vmul.f32 %v1167, 0.40528473
          %v1176 = vmul.f32 %v1168, 0.40528473
          %v1177 = vmul.f32 %v1169, 0.40528473
          %v1178 = vmul.f32 %v1170, %v1162
          %v1179 = vmul.f32 %v1171, %v1163
          %v1180 = vmul.f32 %v1172, %v1164
          %v1181 = vmul.f32 %v1173, %v1165
          %v1182 = vmul.f32 %v1174, %v1166
          %v1183 = vmul.f32 %v1175, %v1167
          %v1184 = vmul.f32 %v1176, %v1168
          %v1185 = vmul.f32 %v1177, %v1169
          %v1186 = vadd.f32 %v530, %v746
          %v1187 = vadd.f32 %v531, %v747
          %v1188 = vadd.f32 %v532, %v748
          %v1189 = vadd.f32 %v533, %v749
          %v1190 = vadd.f32 %v534, %v750
          %v1191 = vadd.f32 %v535, %v751
          %v1192 = vadd.f32 %v536, %v752
          %v1193 = vadd.f32 %v537, %v753
          %v1194 = vmul.f32 %v1178, %v1178
          %v1195 = vmul.f32 %v1179, %v1179
          %v1196 = vmul.f32 %v1180, %v1180
          %v1197 = vmul.f32 %v1181, %v1181
          %v1198 = vmul.f32 %v1182, %v1182
          %v1199 = vmul.f32 %v1183, %v1183
          %v1200 = vmul.f32 %v1184, %v1184
          %v1201 = vmul.f32 %v1185, %v1185
          %v1202 = vmul.f32 %v1194, 0.5
          %v1203 = vmul.f32 %v1195, 0.5
          %v1204 = vmul.f32 %v1196, 0.5
          %v1205 = vmul.f32 %v1197, 0.5
          %v1206 = vmul.f32 %v1198, 0.5
          %v1207 = vmul.f32 %v1199, 0.5
          %v1208 = vmul.f32 %v1200, 0.5
          %v1209 = vmul.f32 %v1201, 0.5
          %v1210 = vadd.f32 %v530, %v1178
          %v1211 = vadd.f32 %v531, %v1179
          %v1212 = vadd.f32 %v532, %v1180
          %v1213 = vadd.f32 %v533, %v1181
          %v1214 = vadd.f32 %v534, %v1182
          %v1215 = vadd.f32 %v535, %v1183
          %v1216 = vadd.f32 %v536, %v1184
          %v1217 = vadd.f32 %v537, %v1185
          %v1218 = vrcp.pop %v1210
          %v1219 = vrcp.pop %v1211
          %v1220 = vrcp.pop %v1212
          %v1221 = vrcp.pop %v1213
          %v1222 = vrcp.pop %v1214
          %v1223 = vrcp.pop %v1215
          %v1224 = vrcp.pop %v1216
          %v1225 = vrcp.pop %v1217
          %v1226 = vmul.f32 %v1210, %v1218
          %v1227 = vmul.f32 %v1211, %v1219
          %v1228 = vmul.f32 %v1212, %v1220
          %v1229 = vmul.f32 %v1213, %v1221
          %v1230 = vmul.f32 %v1214, %v1222
          %v1231 = vmul.f32 %v1215, %v1223
          %v1232 = vmul.f32 %v1216, %v1224
          %v1233 = vmul.f32 %v1217, %v1225
          %v1234 = vsub.f32 2.0, %v1226
          %v1235 = vsub.f32 2.0, %v1227
          %v1236 = vsub.f32 2.0, %v1228
          %v1237 = vsub.f32 2.0, %v1229
          %v1238 = vsub.f32 2.0, %v1230
          %v1239 = vsub.f32 2.0, %v1231
          %v1240 = vsub.f32 2.0, %v1232
          %v1241 = vsub.f32 2.0, %v1233
          %v1242 = vmul.f32 %v1218, %v1234
          %v1243 = vmul.f32 %v1219, %v1235
          %v1244 = vmul.f32 %v1220, %v1236
          %v1245 = vmul.f32 %v1221, %v1237
          %v1246 = vmul.f32 %v1222, %v1238
          %v1247 = vmul.f32 %v1223, %v1239
          %v1248 = vmul.f32 %v1224, %v1240
          %v1249 = vmul.f32 %v1225, %v1241
          %v1250 = vmul.f32 %v1202, %v1242
          %v1251 = vmul.f32 %v1203, %v1243
          %v1252 = vmul.f32 %v1204, %v1244
          %v1253 = vmul.f32 %v1205, %v1245
          %v1254 = vmul.f32 %v1206, %v1246
          %v1255 = vmul.f32 %v1207, %v1247
          %v1256 = vmul.f32 %v1208, %v1248
          %v1257 = vmul.f32 %v1209, %v1249
          %v1258 = vadd.f32 %v1186, %v1250
          %v1259 = vadd.f32 %v1187, %v1251
          %v1260 = vadd.f32 %v1188, %v1252
          %v1261 = vadd.f32 %v1189, %v1253
          %v1262 = vadd.f32 %v1190, %v1254
          %v1263 = vadd.f32 %v1191, %v1255
          %v1264 = vadd.f32 %v1192, %v1256
          %v1265 = vadd.f32 %v1193, %v1257
          %v1266 = vld [vmem:[%s271] sm:$0xff]
          %v1267 = vld [vmem:[%s271 + $0x8] sm:$0xff]
          %v1268 = vld [vmem:[%s271 + $0x10] sm:$0xff]
          %v1269 = vld [vmem:[%s271 + $0x18] sm:$0xff]
          %v1270 = vld [vmem:[%s271 + $0x20] sm:$0xff]
          %v1271 = vld [vmem:[%s271 + $0x28] sm:$0xff]
          %v1272 = vld [vmem:[%s271 + $0x30] sm:$0xff]
          %v1273 = vld [vmem:[%s271 + $0x38] sm:$0xff]
          %v1274 = vadd.f32 %v1266, %v1258
          %v1275 = vadd.f32 %v1267, %v1259
          %v1276 = vadd.f32 %v1268, %v1260
          %v1277 = vadd.f32 %v1269, %v1261
          %v1278 = vadd.f32 %v1270, %v1262
          %v1279 = vadd.f32 %v1271, %v1263
          %v1280 = vadd.f32 %v1272, %v1264
          %v1281 = vadd.f32 %v1273, %v1265
          %1282 = vst [vmem:[%s271] sm:$0xff] %v1274
          %1283 = vst [vmem:[%s271 + $0x8] sm:$0xff] %v1275
          %1284 = vst [vmem:[%s271 + $0x10] sm:$0xff] %v1276
          %1285 = vst [vmem:[%s271 + $0x18] sm:$0xff] %v1277
          %1286 = vst [vmem:[%s271 + $0x20] sm:$0xff] %v1278
          %1287 = vst [vmem:[%s271 + $0x28] sm:$0xff] %v1279
          %1288 = vst [vmem:[%s271 + $0x30] sm:$0xff] %v1280
          %1289 = vst [vmem:[%s271 + $0x38] sm:$0xff] %v1281
        $region44: #{tpu_custom_call.1} parent=27 // pred_fallthru
          _
        %p1290 = scmp.gt.s32.totalorder %s291, %s289
        %p1291 = pnand %p293, %p1290
        %p1292 = pneg %p1291
        // Predicated region
        $region45: #{tpu_custom_call.1} parent=27 // pred_check
          _
        $region46: #{tpu_custom_call.1} parent=27 // pred_check_branch
          %1294 = sbr.rel (%p1291) target = $region48
        $region47: #{tpu_custom_call.1} parent=27 // pred_region
          %v1295 = vld [vmem:[%s237] sm:$0xff]
          %v1296 = vld [vmem:[%s237 + $0x8] sm:$0xff]
          %v1297 = vld [vmem:[%s237 + $0x10] sm:$0xff]
          %v1298 = vld [vmem:[%s237 + $0x18] sm:$0xff]
          %v1299 = vld [vmem:[%s237 + $0x20] sm:$0xff]
          %v1300 = vld [vmem:[%s237 + $0x28] sm:$0xff]
          %v1301 = vld [vmem:[%s237 + $0x30] sm:$0xff]
          %v1302 = vld [vmem:[%s237 + $0x38] sm:$0xff]
          %s1303 = sadd.s32 0, 64
          %s1304 = scalar_lea.vmem %s237, %s1303 [#allocation4]
          %v1305 = vld [vmem:[%s1304] sm:$0xff]
          %v1306 = vld [vmem:[%s1304 + $0x8] sm:$0xff]
          %v1307 = vld [vmem:[%s1304 + $0x10] sm:$0xff]
          %v1308 = vld [vmem:[%s1304 + $0x18] sm:$0xff]
          %v1309 = vld [vmem:[%s1304 + $0x20] sm:$0xff]
          %v1310 = vld [vmem:[%s1304 + $0x28] sm:$0xff]
          %v1311 = vld [vmem:[%s1304 + $0x30] sm:$0xff]
          %v1312 = vld [vmem:[%s1304 + $0x38] sm:$0xff]
          %s1313 = sadd.s32 0, 128
          %s1314 = scalar_lea.vmem %s237, %s1313 [#allocation4]
          %v1315 = vld [vmem:[%s1314] sm:$0xff]
          %v1316 = vld [vmem:[%s1314 + $0x8] sm:$0xff]
          %v1317 = vld [vmem:[%s1314 + $0x10] sm:$0xff]
          %v1318 = vld [vmem:[%s1314 + $0x18] sm:$0xff]
          %v1319 = vld [vmem:[%s1314 + $0x20] sm:$0xff]
          %v1320 = vld [vmem:[%s1314 + $0x28] sm:$0xff]
          %v1321 = vld [vmem:[%s1314 + $0x30] sm:$0xff]
          %v1322 = vld [vmem:[%s1314 + $0x38] sm:$0xff]
          %s1323 = sadd.s32 0, 192
          %s1324 = scalar_lea.vmem %s237, %s1323 [#allocation4]
          %v1325 = vld [vmem:[%s1324] sm:$0xff]
          %v1326 = vld [vmem:[%s1324 + $0x8] sm:$0xff]
          %v1327 = vld [vmem:[%s1324 + $0x10] sm:$0xff]
          %v1328 = vld [vmem:[%s1324 + $0x18] sm:$0xff]
          %v1329 = vld [vmem:[%s1324 + $0x20] sm:$0xff]
          %v1330 = vld [vmem:[%s1324 + $0x28] sm:$0xff]
          %v1331 = vld [vmem:[%s1324 + $0x30] sm:$0xff]
          %v1332 = vld [vmem:[%s1324 + $0x38] sm:$0xff]
          %v1333 = vld [vmem:[%s246] sm:$0xff]
          %v1334 = vld [vmem:[%s246 + $0x8] sm:$0xff]
          %v1335 = vld [vmem:[%s246 + $0x10] sm:$0xff]
          %v1336 = vld [vmem:[%s246 + $0x18] sm:$0xff]
          %v1337 = vld [vmem:[%s246 + $0x20] sm:$0xff]
          %v1338 = vld [vmem:[%s246 + $0x28] sm:$0xff]
          %v1339 = vld [vmem:[%s246 + $0x30] sm:$0xff]
          %v1340 = vld [vmem:[%s246 + $0x38] sm:$0xff]
          %s1341 = scalar_lea.vmem %s246, %s1303 [#allocation7]
          %v1342 = vld [vmem:[%s1341] sm:$0xff]
          %v1343 = vld [vmem:[%s1341 + $0x8] sm:$0xff]
          %v1344 = vld [vmem:[%s1341 + $0x10] sm:$0xff]
          %v1345 = vld [vmem:[%s1341 + $0x18] sm:$0xff]
          %v1346 = vld [vmem:[%s1341 + $0x20] sm:$0xff]
          %v1347 = vld [vmem:[%s1341 + $0x28] sm:$0xff]
          %v1348 = vld [vmem:[%s1341 + $0x30] sm:$0xff]
          %v1349 = vld [vmem:[%s1341 + $0x38] sm:$0xff]
          %s1350 = scalar_lea.vmem %s246, %s1313 [#allocation7]
          %v1351 = vld [vmem:[%s1350] sm:$0xff]
          %v1352 = vld [vmem:[%s1350 + $0x8] sm:$0xff]
          %v1353 = vld [vmem:[%s1350 + $0x10] sm:$0xff]
          %v1354 = vld [vmem:[%s1350 + $0x18] sm:$0xff]
          %v1355 = vld [vmem:[%s1350 + $0x20] sm:$0xff]
          %v1356 = vld [vmem:[%s1350 + $0x28] sm:$0xff]
          %v1357 = vld [vmem:[%s1350 + $0x30] sm:$0xff]
          %v1358 = vld [vmem:[%s1350 + $0x38] sm:$0xff]
          %s1359 = scalar_lea.vmem %s246, %s1323 [#allocation7]
          %v1360 = vld [vmem:[%s1359] sm:$0xff]
          %v1361 = vld [vmem:[%s1359 + $0x8] sm:$0xff]
          %v1362 = vld [vmem:[%s1359 + $0x10] sm:$0xff]
          %v1363 = vld [vmem:[%s1359 + $0x18] sm:$0xff]
          %v1364 = vld [vmem:[%s1359 + $0x20] sm:$0xff]
          %v1365 = vld [vmem:[%s1359 + $0x28] sm:$0xff]
          %v1366 = vld [vmem:[%s1359 + $0x30] sm:$0xff]
          %v1367 = vld [vmem:[%s1359 + $0x38] sm:$0xff]
          %v1368 = vsub.f32 %v1315, %v1295
          %v1369 = vsub.f32 %v1316, %v1296
          %v1370 = vsub.f32 %v1317, %v1297
          %v1371 = vsub.f32 %v1318, %v1298
          %v1372 = vsub.f32 %v1319, %v1299
          %v1373 = vsub.f32 %v1320, %v1300
          %v1374 = vsub.f32 %v1321, %v1301
          %v1375 = vsub.f32 %v1322, %v1302
          %v1376 = vsub.f32 %v1325, %v1305
          %v1377 = vsub.f32 %v1326, %v1306
          %v1378 = vsub.f32 %v1327, %v1307
          %v1379 = vsub.f32 %v1328, %v1308
          %v1380 = vsub.f32 %v1329, %v1309
          %v1381 = vsub.f32 %v1330, %v1310
          %v1382 = vsub.f32 %v1331, %v1311
          %v1383 = vsub.f32 %v1332, %v1312
          %v1384 = vsub.f32 %v1351, %v1333
          %v1385 = vsub.f32 %v1352, %v1334
          %v1386 = vsub.f32 %v1353, %v1335
          %v1387 = vsub.f32 %v1354, %v1336
          %v1388 = vsub.f32 %v1355, %v1337
          %v1389 = vsub.f32 %v1356, %v1338
          %v1390 = vsub.f32 %v1357, %v1339
          %v1391 = vsub.f32 %v1358, %v1340
          %v1392 = vsub.f32 %v1360, %v1342
          %v1393 = vsub.f32 %v1361, %v1343
          %v1394 = vsub.f32 %v1362, %v1344
          %v1395 = vsub.f32 %v1363, %v1345
          %v1396 = vsub.f32 %v1364, %v1346
          %v1397 = vsub.f32 %v1365, %v1347
          %v1398 = vsub.f32 %v1366, %v1348
          %v1399 = vsub.f32 %v1367, %v1349
          %v1400 = vmin.f32 %v1315, %v1351
          %v1401 = vmin.f32 %v1316, %v1352
          %v1402 = vmin.f32 %v1317, %v1353
          %v1403 = vmin.f32 %v1318, %v1354
          %v1404 = vmin.f32 %v1319, %v1355
          %v1405 = vmin.f32 %v1320, %v1356
          %v1406 = vmin.f32 %v1321, %v1357
          %v1407 = vmin.f32 %v1322, %v1358
          %v1408 = vmax.f32 %v1295, %v1333
          %v1409 = vmax.f32 %v1296, %v1334
          %v1410 = vmax.f32 %v1297, %v1335
          %v1411 = vmax.f32 %v1298, %v1336
          %v1412 = vmax.f32 %v1299, %v1337
          %v1413 = vmax.f32 %v1300, %v1338
          %v1414 = vmax.f32 %v1301, %v1339
          %v1415 = vmax.f32 %v1302, %v1340
          %v1416 = vsub.f32 %v1400, %v1408
          %v1417 = vsub.f32 %v1401, %v1409
          %v1418 = vsub.f32 %v1402, %v1410
          %v1419 = vsub.f32 %v1403, %v1411
          %v1420 = vsub.f32 %v1404, %v1412
          %v1421 = vsub.f32 %v1405, %v1413
          %v1422 = vsub.f32 %v1406, %v1414
          %v1423 = vsub.f32 %v1407, %v1415
          %v1424 = vmax.f32 %v1416, 0.0
          %v1425 = vmax.f32 %v1417, 0.0
          %v1426 = vmax.f32 %v1418, 0.0
          %v1427 = vmax.f32 %v1419, 0.0
          %v1428 = vmax.f32 %v1420, 0.0
          %v1429 = vmax.f32 %v1421, 0.0
          %v1430 = vmax.f32 %v1422, 0.0
          %v1431 = vmax.f32 %v1423, 0.0
          %v1432 = vmin.f32 %v1325, %v1360
          %v1433 = vmin.f32 %v1326, %v1361
          %v1434 = vmin.f32 %v1327, %v1362
          %v1435 = vmin.f32 %v1328, %v1363
          %v1436 = vmin.f32 %v1329, %v1364
          %v1437 = vmin.f32 %v1330, %v1365
          %v1438 = vmin.f32 %v1331, %v1366
          %v1439 = vmin.f32 %v1332, %v1367
          %v1440 = vmax.f32 %v1305, %v1342
          %v1441 = vmax.f32 %v1306, %v1343
          %v1442 = vmax.f32 %v1307, %v1344
          %v1443 = vmax.f32 %v1308, %v1345
          %v1444 = vmax.f32 %v1309, %v1346
          %v1445 = vmax.f32 %v1310, %v1347
          %v1446 = vmax.f32 %v1311, %v1348
          %v1447 = vmax.f32 %v1312, %v1349
          %v1448 = vsub.f32 %v1432, %v1440
          %v1449 = vsub.f32 %v1433, %v1441
          %v1450 = vsub.f32 %v1434, %v1442
          %v1451 = vsub.f32 %v1435, %v1443
          %v1452 = vsub.f32 %v1436, %v1444
          %v1453 = vsub.f32 %v1437, %v1445
          %v1454 = vsub.f32 %v1438, %v1446
          %v1455 = vsub.f32 %v1439, %v1447
          %v1456 = vmax.f32 %v1448, 0.0
          %v1457 = vmax.f32 %v1449, 0.0
          %v1458 = vmax.f32 %v1450, 0.0
          %v1459 = vmax.f32 %v1451, 0.0
          %v1460 = vmax.f32 %v1452, 0.0
          %v1461 = vmax.f32 %v1453, 0.0
          %v1462 = vmax.f32 %v1454, 0.0
          %v1463 = vmax.f32 %v1455, 0.0
          %v1464 = vmul.f32 %v1424, %v1456
          %v1465 = vmul.f32 %v1425, %v1457
          %v1466 = vmul.f32 %v1426, %v1458
          %v1467 = vmul.f32 %v1427, %v1459
          %v1468 = vmul.f32 %v1428, %v1460
          %v1469 = vmul.f32 %v1429, %v1461
          %v1470 = vmul.f32 %v1430, %v1462
          %v1471 = vmul.f32 %v1431, %v1463
          %v1472 = vmul.f32 %v1368, %v1376
          %v1473 = vmul.f32 %v1369, %v1377
          %v1474 = vmul.f32 %v1370, %v1378
          %v1475 = vmul.f32 %v1371, %v1379
          %v1476 = vmul.f32 %v1372, %v1380
          %v1477 = vmul.f32 %v1373, %v1381
          %v1478 = vmul.f32 %v1374, %v1382
          %v1479 = vmul.f32 %v1375, %v1383
          %v1480 = vmul.f32 %v1384, %v1392
          %v1481 = vmul.f32 %v1385, %v1393
          %v1482 = vmul.f32 %v1386, %v1394
          %v1483 = vmul.f32 %v1387, %v1395
          %v1484 = vmul.f32 %v1388, %v1396
          %v1485 = vmul.f32 %v1389, %v1397
          %v1486 = vmul.f32 %v1390, %v1398
          %v1487 = vmul.f32 %v1391, %v1399
          %v1488 = vadd.f32 %v1472, %v1480
          %v1489 = vadd.f32 %v1473, %v1481
          %v1490 = vadd.f32 %v1474, %v1482
          %v1491 = vadd.f32 %v1475, %v1483
          %v1492 = vadd.f32 %v1476, %v1484
          %v1493 = vadd.f32 %v1477, %v1485
          %v1494 = vadd.f32 %v1478, %v1486
          %v1495 = vadd.f32 %v1479, %v1487
          %v1496 = vsub.f32 %v1488, %v1464
          %v1497 = vsub.f32 %v1489, %v1465
          %v1498 = vsub.f32 %v1490, %v1466
          %v1499 = vsub.f32 %v1491, %v1467
          %v1500 = vsub.f32 %v1492, %v1468
          %v1501 = vsub.f32 %v1493, %v1469
          %v1502 = vsub.f32 %v1494, %v1470
          %v1503 = vsub.f32 %v1495, %v1471
          %v1504 = vadd.f32 %v1496, 1e-06
          %v1505 = vadd.f32 %v1497, 1e-06
          %v1506 = vadd.f32 %v1498, 1e-06
          %v1507 = vadd.f32 %v1499, 1e-06
          %v1508 = vadd.f32 %v1500, 1e-06
          %v1509 = vadd.f32 %v1501, 1e-06
          %v1510 = vadd.f32 %v1502, 1e-06
          %v1511 = vadd.f32 %v1503, 1e-06
          %v1512 = vrcp.pop %v1504
          %v1513 = vmul.f32 %v1464, %v1512
          %v1514 = vrcp.pop %v1505
          %v1515 = vmul.f32 %v1465, %v1514
          %v1516 = vrcp.pop %v1506
          %v1517 = vmul.f32 %v1466, %v1516
          %v1518 = vrcp.pop %v1507
          %v1519 = vmul.f32 %v1467, %v1518
          %v1520 = vrcp.pop %v1508
          %v1521 = vmul.f32 %v1468, %v1520
          %v1522 = vrcp.pop %v1509
          %v1523 = vmul.f32 %v1469, %v1522
          %v1524 = vrcp.pop %v1510
          %v1525 = vmul.f32 %v1470, %v1524
          %v1526 = vrcp.pop %v1511
          %v1527 = vmul.f32 %v1471, %v1526
          %v1528 = vsub.f32 1.0, %v1513
          %v1529 = vsub.f32 1.0, %v1515
          %v1530 = vsub.f32 1.0, %v1517
          %v1531 = vsub.f32 1.0, %v1519
          %v1532 = vsub.f32 1.0, %v1521
          %v1533 = vsub.f32 1.0, %v1523
          %v1534 = vsub.f32 1.0, %v1525
          %v1535 = vsub.f32 1.0, %v1527
          %v1536 = vmax.f32 %v1315, %v1351
          %v1537 = vmax.f32 %v1316, %v1352
          %v1538 = vmax.f32 %v1317, %v1353
          %v1539 = vmax.f32 %v1318, %v1354
          %v1540 = vmax.f32 %v1319, %v1355
          %v1541 = vmax.f32 %v1320, %v1356
          %v1542 = vmax.f32 %v1321, %v1357
          %v1543 = vmax.f32 %v1322, %v1358
          %v1544 = vmin.f32 %v1295, %v1333
          %v1545 = vmin.f32 %v1296, %v1334
          %v1546 = vmin.f32 %v1297, %v1335
          %v1547 = vmin.f32 %v1298, %v1336
          %v1548 = vmin.f32 %v1299, %v1337
          %v1549 = vmin.f32 %v1300, %v1338
          %v1550 = vmin.f32 %v1301, %v1339
          %v1551 = vmin.f32 %v1302, %v1340
          %v1552 = vsub.f32 %v1536, %v1544
          %v1553 = vsub.f32 %v1537, %v1545
          %v1554 = vsub.f32 %v1538, %v1546
          %v1555 = vsub.f32 %v1539, %v1547
          %v1556 = vsub.f32 %v1540, %v1548
          %v1557 = vsub.f32 %v1541, %v1549
          %v1558 = vsub.f32 %v1542, %v1550
          %v1559 = vsub.f32 %v1543, %v1551
          %v1560 = vmax.f32 %v1552, 0.0
          %v1561 = vmax.f32 %v1553, 0.0
          %v1562 = vmax.f32 %v1554, 0.0
          %v1563 = vmax.f32 %v1555, 0.0
          %v1564 = vmax.f32 %v1556, 0.0
          %v1565 = vmax.f32 %v1557, 0.0
          %v1566 = vmax.f32 %v1558, 0.0
          %v1567 = vmax.f32 %v1559, 0.0
          %v1568 = vmax.f32 %v1325, %v1360
          %v1569 = vmax.f32 %v1326, %v1361
          %v1570 = vmax.f32 %v1327, %v1362
          %v1571 = vmax.f32 %v1328, %v1363
          %v1572 = vmax.f32 %v1329, %v1364
          %v1573 = vmax.f32 %v1330, %v1365
          %v1574 = vmax.f32 %v1331, %v1366
          %v1575 = vmax.f32 %v1332, %v1367
          %v1576 = vmin.f32 %v1305, %v1342
          %v1577 = vmin.f32 %v1306, %v1343
          %v1578 = vmin.f32 %v1307, %v1344
          %v1579 = vmin.f32 %v1308, %v1345
          %v1580 = vmin.f32 %v1309, %v1346
          %v1581 = vmin.f32 %v1310, %v1347
          %v1582 = vmin.f32 %v1311, %v1348
          %v1583 = vmin.f32 %v1312, %v1349
          %v1584 = vsub.f32 %v1568, %v1576
          %v1585 = vsub.f32 %v1569, %v1577
          %v1586 = vsub.f32 %v1570, %v1578
          %v1587 = vsub.f32 %v1571, %v1579
          %v1588 = vsub.f32 %v1572, %v1580
          %v1589 = vsub.f32 %v1573, %v1581
          %v1590 = vsub.f32 %v1574, %v1582
          %v1591 = vsub.f32 %v1575, %v1583
          %v1592 = vmax.f32 %v1584, 0.0
          %v1593 = vmax.f32 %v1585, 0.0
          %v1594 = vmax.f32 %v1586, 0.0
          %v1595 = vmax.f32 %v1587, 0.0
          %v1596 = vmax.f32 %v1588, 0.0
          %v1597 = vmax.f32 %v1589, 0.0
          %v1598 = vmax.f32 %v1590, 0.0
          %v1599 = vmax.f32 %v1591, 0.0
          %v1600 = vmul.f32 %v1560, %v1560
          %v1601 = vmul.f32 %v1561, %v1561
          %v1602 = vmul.f32 %v1562, %v1562
          %v1603 = vmul.f32 %v1563, %v1563
          %v1604 = vmul.f32 %v1564, %v1564
          %v1605 = vmul.f32 %v1565, %v1565
          %v1606 = vmul.f32 %v1566, %v1566
          %v1607 = vmul.f32 %v1567, %v1567
          %v1608 = vmul.f32 %v1592, %v1592
          %v1609 = vmul.f32 %v1593, %v1593
          %v1610 = vmul.f32 %v1594, %v1594
          %v1611 = vmul.f32 %v1595, %v1595
          %v1612 = vmul.f32 %v1596, %v1596
          %v1613 = vmul.f32 %v1597, %v1597
          %v1614 = vmul.f32 %v1598, %v1598
          %v1615 = vmul.f32 %v1599, %v1599
          %v1616 = vadd.f32 %v1600, %v1608
          %v1617 = vadd.f32 %v1601, %v1609
          %v1618 = vadd.f32 %v1602, %v1610
          %v1619 = vadd.f32 %v1603, %v1611
          %v1620 = vadd.f32 %v1604, %v1612
          %v1621 = vadd.f32 %v1605, %v1613
          %v1622 = vadd.f32 %v1606, %v1614
          %v1623 = vadd.f32 %v1607, %v1615
          %v1624 = vadd.f32 %v1616, 1e-06
          %v1625 = vadd.f32 %v1617, 1e-06
          %v1626 = vadd.f32 %v1618, 1e-06
          %v1627 = vadd.f32 %v1619, 1e-06
          %v1628 = vadd.f32 %v1620, 1e-06
          %v1629 = vadd.f32 %v1621, 1e-06
          %v1630 = vadd.f32 %v1622, 1e-06
          %v1631 = vadd.f32 %v1623, 1e-06
          %v1632 = vadd.f32 %v1333, %v1351
          %v1633 = vadd.f32 %v1334, %v1352
          %v1634 = vadd.f32 %v1335, %v1353
          %v1635 = vadd.f32 %v1336, %v1354
          %v1636 = vadd.f32 %v1337, %v1355
          %v1637 = vadd.f32 %v1338, %v1356
          %v1638 = vadd.f32 %v1339, %v1357
          %v1639 = vadd.f32 %v1340, %v1358
          %v1640 = vadd.f32 %v1295, %v1315
          %v1641 = vadd.f32 %v1296, %v1316
          %v1642 = vadd.f32 %v1297, %v1317
          %v1643 = vadd.f32 %v1298, %v1318
          %v1644 = vadd.f32 %v1299, %v1319
          %v1645 = vadd.f32 %v1300, %v1320
          %v1646 = vadd.f32 %v1301, %v1321
          %v1647 = vadd.f32 %v1302, %v1322
          %v1648 = vsub.f32 %v1632, %v1640
          %v1649 = vsub.f32 %v1633, %v1641
          %v1650 = vsub.f32 %v1634, %v1642
          %v1651 = vsub.f32 %v1635, %v1643
          %v1652 = vsub.f32 %v1636, %v1644
          %v1653 = vsub.f32 %v1637, %v1645
          %v1654 = vsub.f32 %v1638, %v1646
          %v1655 = vsub.f32 %v1639, %v1647
          %v1656 = vadd.f32 %v1342, %v1360
          %v1657 = vadd.f32 %v1343, %v1361
          %v1658 = vadd.f32 %v1344, %v1362
          %v1659 = vadd.f32 %v1345, %v1363
          %v1660 = vadd.f32 %v1346, %v1364
          %v1661 = vadd.f32 %v1347, %v1365
          %v1662 = vadd.f32 %v1348, %v1366
          %v1663 = vadd.f32 %v1349, %v1367
          %v1664 = vadd.f32 %v1305, %v1325
          %v1665 = vadd.f32 %v1306, %v1326
          %v1666 = vadd.f32 %v1307, %v1327
          %v1667 = vadd.f32 %v1308, %v1328
          %v1668 = vadd.f32 %v1309, %v1329
          %v1669 = vadd.f32 %v1310, %v1330
          %v1670 = vadd.f32 %v1311, %v1331
          %v1671 = vadd.f32 %v1312, %v1332
          %v1672 = vsub.f32 %v1656, %v1664
          %v1673 = vsub.f32 %v1657, %v1665
          %v1674 = vsub.f32 %v1658, %v1666
          %v1675 = vsub.f32 %v1659, %v1667
          %v1676 = vsub.f32 %v1660, %v1668
          %v1677 = vsub.f32 %v1661, %v1669
          %v1678 = vsub.f32 %v1662, %v1670
          %v1679 = vsub.f32 %v1663, %v1671
          %v1680 = vmul.f32 %v1648, %v1648
          %v1681 = vmul.f32 %v1649, %v1649
          %v1682 = vmul.f32 %v1650, %v1650
          %v1683 = vmul.f32 %v1651, %v1651
          %v1684 = vmul.f32 %v1652, %v1652
          %v1685 = vmul.f32 %v1653, %v1653
          %v1686 = vmul.f32 %v1654, %v1654
          %v1687 = vmul.f32 %v1655, %v1655
          %v1688 = vmul.f32 %v1672, %v1672
          %v1689 = vmul.f32 %v1673, %v1673
          %v1690 = vmul.f32 %v1674, %v1674
          %v1691 = vmul.f32 %v1675, %v1675
          %v1692 = vmul.f32 %v1676, %v1676
          %v1693 = vmul.f32 %v1677, %v1677
          %v1694 = vmul.f32 %v1678, %v1678
          %v1695 = vmul.f32 %v1679, %v1679
          %v1696 = vadd.f32 %v1680, %v1688
          %v1697 = vadd.f32 %v1681, %v1689
          %v1698 = vadd.f32 %v1682, %v1690
          %v1699 = vadd.f32 %v1683, %v1691
          %v1700 = vadd.f32 %v1684, %v1692
          %v1701 = vadd.f32 %v1685, %v1693
          %v1702 = vadd.f32 %v1686, %v1694
          %v1703 = vadd.f32 %v1687, %v1695
          %v1704 = vmul.f32 %v1696, 0.25
          %v1705 = vmul.f32 %v1697, 0.25
          %v1706 = vmul.f32 %v1698, 0.25
          %v1707 = vmul.f32 %v1699, 0.25
          %v1708 = vmul.f32 %v1700, 0.25
          %v1709 = vmul.f32 %v1701, 0.25
          %v1710 = vmul.f32 %v1702, 0.25
          %v1711 = vmul.f32 %v1703, 0.25
          %v1712 = vrcp.pop %v1624
          %v1713 = vrcp.pop %v1625
          %v1714 = vrcp.pop %v1626
          %v1715 = vrcp.pop %v1627
          %v1716 = vrcp.pop %v1628
          %v1717 = vrcp.pop %v1629
          %v1718 = vrcp.pop %v1630
          %v1719 = vrcp.pop %v1631
          %v1720 = vmul.f32 %v1624, %v1712
          %v1721 = vmul.f32 %v1625, %v1713
          %v1722 = vmul.f32 %v1626, %v1714
          %v1723 = vmul.f32 %v1627, %v1715
          %v1724 = vmul.f32 %v1628, %v1716
          %v1725 = vmul.f32 %v1629, %v1717
          %v1726 = vmul.f32 %v1630, %v1718
          %v1727 = vmul.f32 %v1631, %v1719
          %v1728 = vsub.f32 2.0, %v1720
          %v1729 = vsub.f32 2.0, %v1721
          %v1730 = vsub.f32 2.0, %v1722
          %v1731 = vsub.f32 2.0, %v1723
          %v1732 = vsub.f32 2.0, %v1724
          %v1733 = vsub.f32 2.0, %v1725
          %v1734 = vsub.f32 2.0, %v1726
          %v1735 = vsub.f32 2.0, %v1727
          %v1736 = vmul.f32 %v1712, %v1728
          %v1737 = vmul.f32 %v1713, %v1729
          %v1738 = vmul.f32 %v1714, %v1730
          %v1739 = vmul.f32 %v1715, %v1731
          %v1740 = vmul.f32 %v1716, %v1732
          %v1741 = vmul.f32 %v1717, %v1733
          %v1742 = vmul.f32 %v1718, %v1734
          %v1743 = vmul.f32 %v1719, %v1735
          %v1744 = vmul.f32 %v1704, %v1736
          %v1745 = vmul.f32 %v1705, %v1737
          %v1746 = vmul.f32 %v1706, %v1738
          %v1747 = vmul.f32 %v1707, %v1739
          %v1748 = vmul.f32 %v1708, %v1740
          %v1749 = vmul.f32 %v1709, %v1741
          %v1750 = vmul.f32 %v1710, %v1742
          %v1751 = vmul.f32 %v1711, %v1743
          %v1752 = vadd.f32 %v1376, 1e-06
          %v1753 = vadd.f32 %v1377, 1e-06
          %v1754 = vadd.f32 %v1378, 1e-06
          %v1755 = vadd.f32 %v1379, 1e-06
          %v1756 = vadd.f32 %v1380, 1e-06
          %v1757 = vadd.f32 %v1381, 1e-06
          %v1758 = vadd.f32 %v1382, 1e-06
          %v1759 = vadd.f32 %v1383, 1e-06
          %v1760 = vadd.f32 %v1392, 1e-06
          %v1761 = vadd.f32 %v1393, 1e-06
          %v1762 = vadd.f32 %v1394, 1e-06
          %v1763 = vadd.f32 %v1395, 1e-06
          %v1764 = vadd.f32 %v1396, 1e-06
          %v1765 = vadd.f32 %v1397, 1e-06
          %v1766 = vadd.f32 %v1398, 1e-06
          %v1767 = vadd.f32 %v1399, 1e-06
          %v1768 = vmul.f32 %v1752, %v1760
          %v1769 = vmul.f32 %v1753, %v1761
          %v1770 = vmul.f32 %v1754, %v1762
          %v1771 = vmul.f32 %v1755, %v1763
          %v1772 = vmul.f32 %v1756, %v1764
          %v1773 = vmul.f32 %v1757, %v1765
          %v1774 = vmul.f32 %v1758, %v1766
          %v1775 = vmul.f32 %v1759, %v1767
          %v1776 = vmul.f32 %v1384, %v1752
          %v1777 = vmul.f32 %v1385, %v1753
          %v1778 = vmul.f32 %v1386, %v1754
          %v1779 = vmul.f32 %v1387, %v1755
          %v1780 = vmul.f32 %v1388, %v1756
          %v1781 = vmul.f32 %v1389, %v1757
          %v1782 = vmul.f32 %v1390, %v1758
          %v1783 = vmul.f32 %v1391, %v1759
          %v1784 = vmul.f32 %v1368, %v1760
          %v1785 = vmul.f32 %v1369, %v1761
          %v1786 = vmul.f32 %v1370, %v1762
          %v1787 = vmul.f32 %v1371, %v1763
          %v1788 = vmul.f32 %v1372, %v1764
          %v1789 = vmul.f32 %v1373, %v1765
          %v1790 = vmul.f32 %v1374, %v1766
          %v1791 = vmul.f32 %v1375, %v1767
          %v1792 = vsub.f32 %v1776, %v1784
          %v1793 = vsub.f32 %v1777, %v1785
          %v1794 = vsub.f32 %v1778, %v1786
          %v1795 = vsub.f32 %v1779, %v1787
          %v1796 = vsub.f32 %v1780, %v1788
          %v1797 = vsub.f32 %v1781, %v1789
          %v1798 = vsub.f32 %v1782, %v1790
          %v1799 = vsub.f32 %v1783, %v1791
          %v1800 = vmul.f32 %v1368, %v1384
          %v1801 = vmul.f32 %v1369, %v1385
          %v1802 = vmul.f32 %v1370, %v1386
          %v1803 = vmul.f32 %v1371, %v1387
          %v1804 = vmul.f32 %v1372, %v1388
          %v1805 = vmul.f32 %v1373, %v1389
          %v1806 = vmul.f32 %v1374, %v1390
          %v1807 = vmul.f32 %v1375, %v1391
          %v1808 = vadd.f32 %v1768, %v1800
          %v1809 = vadd.f32 %v1769, %v1801
          %v1810 = vadd.f32 %v1770, %v1802
          %v1811 = vadd.f32 %v1771, %v1803
          %v1812 = vadd.f32 %v1772, %v1804
          %v1813 = vadd.f32 %v1773, %v1805
          %v1814 = vadd.f32 %v1774, %v1806
          %v1815 = vadd.f32 %v1775, %v1807
          %v1816 = vrcp.pop %v1808
          %v1817 = vrcp.pop %v1809
          %v1818 = vrcp.pop %v1810
          %v1819 = vrcp.pop %v1811
          %v1820 = vrcp.pop %v1812
          %v1821 = vrcp.pop %v1813
          %v1822 = vrcp.pop %v1814
          %v1823 = vrcp.pop %v1815
          %v1824 = vmul.f32 %v1808, %v1816
          %v1825 = vmul.f32 %v1809, %v1817
          %v1826 = vmul.f32 %v1810, %v1818
          %v1827 = vmul.f32 %v1811, %v1819
          %v1828 = vmul.f32 %v1812, %v1820
          %v1829 = vmul.f32 %v1813, %v1821
          %v1830 = vmul.f32 %v1814, %v1822
          %v1831 = vmul.f32 %v1815, %v1823
          %v1832 = vsub.f32 2.0, %v1824
          %v1833 = vsub.f32 2.0, %v1825
          %v1834 = vsub.f32 2.0, %v1826
          %v1835 = vsub.f32 2.0, %v1827
          %v1836 = vsub.f32 2.0, %v1828
          %v1837 = vsub.f32 2.0, %v1829
          %v1838 = vsub.f32 2.0, %v1830
          %v1839 = vsub.f32 2.0, %v1831
          %v1840 = vmul.f32 %v1816, %v1832
          %v1841 = vmul.f32 %v1817, %v1833
          %v1842 = vmul.f32 %v1818, %v1834
          %v1843 = vmul.f32 %v1819, %v1835
          %v1844 = vmul.f32 %v1820, %v1836
          %v1845 = vmul.f32 %v1821, %v1837
          %v1846 = vmul.f32 %v1822, %v1838
          %v1847 = vmul.f32 %v1823, %v1839
          %v1848 = vmul.f32 %v1792, %v1840
          %v1849 = vmul.f32 %v1793, %v1841
          %v1850 = vmul.f32 %v1794, %v1842
          %v1851 = vmul.f32 %v1795, %v1843
          %v1852 = vmul.f32 %v1796, %v1844
          %v1853 = vmul.f32 %v1797, %v1845
          %v1854 = vmul.f32 %v1798, %v1846
          %v1855 = vmul.f32 %v1799, %v1847
          %vm1856 = vcmp.lt.f32.partialorder %v1848, 0.0
          %vm1857 = vcmp.lt.f32.partialorder %v1849, 0.0
          %vm1858 = vcmp.lt.f32.partialorder %v1850, 0.0
          %vm1859 = vcmp.lt.f32.partialorder %v1851, 0.0
          %vm1860 = vcmp.lt.f32.partialorder %v1852, 0.0
          %vm1861 = vcmp.lt.f32.partialorder %v1853, 0.0
          %vm1862 = vcmp.lt.f32.partialorder %v1854, 0.0
          %vm1863 = vcmp.lt.f32.partialorder %v1855, 0.0
          %v1864 = vsel %vm1856, -1.0, 1.0
          %v1865 = vsel %vm1857, -1.0, 1.0
          %v1866 = vsel %vm1858, -1.0, 1.0
          %v1867 = vsel %vm1859, -1.0, 1.0
          %v1868 = vsel %vm1860, -1.0, 1.0
          %v1869 = vsel %vm1861, -1.0, 1.0
          %v1870 = vsel %vm1862, -1.0, 1.0
          %v1871 = vsel %vm1863, -1.0, 1.0
          %v1872 = vand.u32 2147483647, %v1848
          %v1873 = vand.u32 2147483647, %v1849
          %v1874 = vand.u32 2147483647, %v1850
          %v1875 = vand.u32 2147483647, %v1851
          %v1876 = vand.u32 2147483647, %v1852
          %v1877 = vand.u32 2147483647, %v1853
          %v1878 = vand.u32 2147483647, %v1854
          %v1879 = vand.u32 2147483647, %v1855
          %vm1880 = vcmp.gt.f32.partialorder %v1872, 2.4142137
          %vm1881 = vcmp.gt.f32.partialorder %v1873, 2.4142137
          %vm1882 = vcmp.gt.f32.partialorder %v1874, 2.4142137
          %vm1883 = vcmp.gt.f32.partialorder %v1875, 2.4142137
          %vm1884 = vcmp.gt.f32.partialorder %v1876, 2.4142137
          %vm1885 = vcmp.gt.f32.partialorder %v1877, 2.4142137
          %vm1886 = vcmp.gt.f32.partialorder %v1878, 2.4142137
          %vm1887 = vcmp.gt.f32.partialorder %v1879, 2.4142137
          %vm1888 = vmxor %vm1880, 1
          %vm1889 = vmxor %vm1881, 1
          %vm1890 = vmxor %vm1882, 1
          %vm1891 = vmxor %vm1883, 1
          %vm1892 = vmxor %vm1884, 1
          %vm1893 = vmxor %vm1885, 1
          %vm1894 = vmxor %vm1886, 1
          %vm1895 = vmxor %vm1887, 1
          %vm1896 = vcmp.gt.f32.partialorder %v1872, 0.41421357
          %vm1897 = vcmp.gt.f32.partialorder %v1873, 0.41421357
          %vm1898 = vcmp.gt.f32.partialorder %v1874, 0.41421357
          %vm1899 = vcmp.gt.f32.partialorder %v1875, 0.41421357
          %vm1900 = vcmp.gt.f32.partialorder %v1876, 0.41421357
          %vm1901 = vcmp.gt.f32.partialorder %v1877, 0.41421357
          %vm1902 = vcmp.gt.f32.partialorder %v1878, 0.41421357
          %vm1903 = vcmp.gt.f32.partialorder %v1879, 0.41421357
          %vm1904 = vmand %vm1888, %vm1896
          %vm1905 = vmand %vm1889, %vm1897
          %vm1906 = vmand %vm1890, %vm1898
          %vm1907 = vmand %vm1891, %vm1899
          %vm1908 = vmand %vm1892, %vm1900
          %vm1909 = vmand %vm1893, %vm1901
          %vm1910 = vmand %vm1894, %vm1902
          %vm1911 = vmand %vm1895, %vm1903
          %v1912 = vsub.f32 %v1872, 1.0
          %v1913 = vsub.f32 %v1873, 1.0
          %v1914 = vsub.f32 %v1874, 1.0
          %v1915 = vsub.f32 %v1875, 1.0
          %v1916 = vsub.f32 %v1876, 1.0
          %v1917 = vsub.f32 %v1877, 1.0
          %v1918 = vsub.f32 %v1878, 1.0
          %v1919 = vsub.f32 %v1879, 1.0
          %v1920 = vsel %vm1904, %v1912, %v1872
          %v1921 = vsel %vm1905, %v1913, %v1873
          %v1922 = vsel %vm1906, %v1914, %v1874
          %v1923 = vsel %vm1907, %v1915, %v1875
          %v1924 = vsel %vm1908, %v1916, %v1876
          %v1925 = vsel %vm1909, %v1917, %v1877
          %v1926 = vsel %vm1910, %v1918, %v1878
          %v1927 = vsel %vm1911, %v1919, %v1879
          %v1928 = vsel %vm1880, -1.0, %v1920
          %v1929 = vsel %vm1881, -1.0, %v1921
          %v1930 = vsel %vm1882, -1.0, %v1922
          %v1931 = vsel %vm1883, -1.0, %v1923
          %v1932 = vsel %vm1884, -1.0, %v1924
          %v1933 = vsel %vm1885, -1.0, %v1925
          %v1934 = vsel %vm1886, -1.0, %v1926
          %v1935 = vsel %vm1887, -1.0, %v1927
          %v1936 = vadd.f32 %v1872, 1.0
          %v1937 = vadd.f32 %v1873, 1.0
          %v1938 = vadd.f32 %v1874, 1.0
          %v1939 = vadd.f32 %v1875, 1.0
          %v1940 = vadd.f32 %v1876, 1.0
          %v1941 = vadd.f32 %v1877, 1.0
          %v1942 = vadd.f32 %v1878, 1.0
          %v1943 = vadd.f32 %v1879, 1.0
          %v1944 = vsel %vm1904, %v1936, 1.0
          %v1945 = vsel %vm1905, %v1937, 1.0
          %v1946 = vsel %vm1906, %v1938, 1.0
          %v1947 = vsel %vm1907, %v1939, 1.0
          %v1948 = vsel %vm1908, %v1940, 1.0
          %v1949 = vsel %vm1909, %v1941, 1.0
          %v1950 = vsel %vm1910, %v1942, 1.0
          %v1951 = vsel %vm1911, %v1943, 1.0
          %v1952 = vsel %vm1880, %v1872, %v1944
          %v1953 = vsel %vm1881, %v1873, %v1945
          %v1954 = vsel %vm1882, %v1874, %v1946
          %v1955 = vsel %vm1883, %v1875, %v1947
          %v1956 = vsel %vm1884, %v1876, %v1948
          %v1957 = vsel %vm1885, %v1877, %v1949
          %v1958 = vsel %vm1886, %v1878, %v1950
          %v1959 = vsel %vm1887, %v1879, %v1951
          %v1960 = vrcp.pop %v1952
          %v1961 = vrcp.pop %v1953
          %v1962 = vrcp.pop %v1954
          %v1963 = vrcp.pop %v1955
          %v1964 = vrcp.pop %v1956
          %v1965 = vrcp.pop %v1957
          %v1966 = vrcp.pop %v1958
          %v1967 = vrcp.pop %v1959
          %v1968 = vmul.f32 %v1952, %v1960
          %v1969 = vmul.f32 %v1953, %v1961
          %v1970 = vmul.f32 %v1954, %v1962
          %v1971 = vmul.f32 %v1955, %v1963
          %v1972 = vmul.f32 %v1956, %v1964
          %v1973 = vmul.f32 %v1957, %v1965
          %v1974 = vmul.f32 %v1958, %v1966
          %v1975 = vmul.f32 %v1959, %v1967
          %v1976 = vsub.f32 2.0, %v1968
          %v1977 = vsub.f32 2.0, %v1969
          %v1978 = vsub.f32 2.0, %v1970
          %v1979 = vsub.f32 2.0, %v1971
          %v1980 = vsub.f32 2.0, %v1972
          %v1981 = vsub.f32 2.0, %v1973
          %v1982 = vsub.f32 2.0, %v1974
          %v1983 = vsub.f32 2.0, %v1975
          %v1984 = vmul.f32 %v1960, %v1976
          %v1985 = vmul.f32 %v1961, %v1977
          %v1986 = vmul.f32 %v1962, %v1978
          %v1987 = vmul.f32 %v1963, %v1979
          %v1988 = vmul.f32 %v1964, %v1980
          %v1989 = vmul.f32 %v1965, %v1981
          %v1990 = vmul.f32 %v1966, %v1982
          %v1991 = vmul.f32 %v1967, %v1983
          %v1992 = vmul.f32 %v1928, %v1984
          %v1993 = vmul.f32 %v1929, %v1985
          %v1994 = vmul.f32 %v1930, %v1986
          %v1995 = vmul.f32 %v1931, %v1987
          %v1996 = vmul.f32 %v1932, %v1988
          %v1997 = vmul.f32 %v1933, %v1989
          %v1998 = vmul.f32 %v1934, %v1990
          %v1999 = vmul.f32 %v1935, %v1991
          %v2000 = vsel %vm1904, 0.7853982, 0.0
          %v2001 = vsel %vm1905, 0.7853982, 0.0
          %v2002 = vsel %vm1906, 0.7853982, 0.0
          %v2003 = vsel %vm1907, 0.7853982, 0.0
          %v2004 = vsel %vm1908, 0.7853982, 0.0
          %v2005 = vsel %vm1909, 0.7853982, 0.0
          %v2006 = vsel %vm1910, 0.7853982, 0.0
          %v2007 = vsel %vm1911, 0.7853982, 0.0
          %v2008 = vsel %vm1880, 1.5707964, %v2000
          %v2009 = vsel %vm1881, 1.5707964, %v2001
          %v2010 = vsel %vm1882, 1.5707964, %v2002
          %v2011 = vsel %vm1883, 1.5707964, %v2003
          %v2012 = vsel %vm1884, 1.5707964, %v2004
          %v2013 = vsel %vm1885, 1.5707964, %v2005
          %v2014 = vsel %vm1886, 1.5707964, %v2006
          %v2015 = vsel %vm1887, 1.5707964, %v2007
          %v2016 = vmul.f32 %v1992, %v1992
          %v2017 = vmul.f32 %v1993, %v1993
          %v2018 = vmul.f32 %v1994, %v1994
          %v2019 = vmul.f32 %v1995, %v1995
          %v2020 = vmul.f32 %v1996, %v1996
          %v2021 = vmul.f32 %v1997, %v1997
          %v2022 = vmul.f32 %v1998, %v1998
          %v2023 = vmul.f32 %v1999, %v1999
          %v2024 = vmul.f32 %v2016, 0.080537446
          %v2025 = vmul.f32 %v2017, 0.080537446
          %v2026 = vmul.f32 %v2018, 0.080537446
          %v2027 = vmul.f32 %v2019, 0.080537446
          %v2028 = vmul.f32 %v2020, 0.080537446
          %v2029 = vmul.f32 %v2021, 0.080537446
          %v2030 = vmul.f32 %v2022, 0.080537446
          %v2031 = vmul.f32 %v2023, 0.080537446
          %v2032 = vsub.f32 %v2024, 0.13877685
          %v2033 = vsub.f32 %v2025, 0.13877685
          %v2034 = vsub.f32 %v2026, 0.13877685
          %v2035 = vsub.f32 %v2027, 0.13877685
          %v2036 = vsub.f32 %v2028, 0.13877685
          %v2037 = vsub.f32 %v2029, 0.13877685
          %v2038 = vsub.f32 %v2030, 0.13877685
          %v2039 = vsub.f32 %v2031, 0.13877685
          %v2040 = vmul.f32 %v2032, %v2016
          %v2041 = vmul.f32 %v2033, %v2017
          %v2042 = vmul.f32 %v2034, %v2018
          %v2043 = vmul.f32 %v2035, %v2019
          %v2044 = vmul.f32 %v2036, %v2020
          %v2045 = vmul.f32 %v2037, %v2021
          %v2046 = vmul.f32 %v2038, %v2022
          %v2047 = vmul.f32 %v2039, %v2023
          %v2048 = vadd.f32 %v2040, 0.19977711
          %v2049 = vadd.f32 %v2041, 0.19977711
          %v2050 = vadd.f32 %v2042, 0.19977711
          %v2051 = vadd.f32 %v2043, 0.19977711
          %v2052 = vadd.f32 %v2044, 0.19977711
          %v2053 = vadd.f32 %v2045, 0.19977711
          %v2054 = vadd.f32 %v2046, 0.19977711
          %v2055 = vadd.f32 %v2047, 0.19977711
          %v2056 = vmul.f32 %v2048, %v2016
          %v2057 = vmul.f32 %v2049, %v2017
          %v2058 = vmul.f32 %v2050, %v2018
          %v2059 = vmul.f32 %v2051, %v2019
          %v2060 = vmul.f32 %v2052, %v2020
          %v2061 = vmul.f32 %v2053, %v2021
          %v2062 = vmul.f32 %v2054, %v2022
          %v2063 = vmul.f32 %v2055, %v2023
          %v2064 = vsub.f32 %v2056, 0.3333295
          %v2065 = vsub.f32 %v2057, 0.3333295
          %v2066 = vsub.f32 %v2058, 0.3333295
          %v2067 = vsub.f32 %v2059, 0.3333295
          %v2068 = vsub.f32 %v2060, 0.3333295
          %v2069 = vsub.f32 %v2061, 0.3333295
          %v2070 = vsub.f32 %v2062, 0.3333295
          %v2071 = vsub.f32 %v2063, 0.3333295
          %v2072 = vmul.f32 %v2064, %v2016
          %v2073 = vmul.f32 %v2065, %v2017
          %v2074 = vmul.f32 %v2066, %v2018
          %v2075 = vmul.f32 %v2067, %v2019
          %v2076 = vmul.f32 %v2068, %v2020
          %v2077 = vmul.f32 %v2069, %v2021
          %v2078 = vmul.f32 %v2070, %v2022
          %v2079 = vmul.f32 %v2071, %v2023
          %v2080 = vmul.f32 %v2072, %v1992
          %v2081 = vmul.f32 %v2073, %v1993
          %v2082 = vmul.f32 %v2074, %v1994
          %v2083 = vmul.f32 %v2075, %v1995
          %v2084 = vmul.f32 %v2076, %v1996
          %v2085 = vmul.f32 %v2077, %v1997
          %v2086 = vmul.f32 %v2078, %v1998
          %v2087 = vmul.f32 %v2079, %v1999
          %v2088 = vadd.f32 %v2008, %v2080
          %v2089 = vadd.f32 %v2009, %v2081
          %v2090 = vadd.f32 %v2010, %v2082
          %v2091 = vadd.f32 %v2011, %v2083
          %v2092 = vadd.f32 %v2012, %v2084
          %v2093 = vadd.f32 %v2013, %v2085
          %v2094 = vadd.f32 %v2014, %v2086
          %v2095 = vadd.f32 %v2015, %v2087
          %v2096 = vadd.f32 %v2088, %v1992
          %v2097 = vadd.f32 %v2089, %v1993
          %v2098 = vadd.f32 %v2090, %v1994
          %v2099 = vadd.f32 %v2091, %v1995
          %v2100 = vadd.f32 %v2092, %v1996
          %v2101 = vadd.f32 %v2093, %v1997
          %v2102 = vadd.f32 %v2094, %v1998
          %v2103 = vadd.f32 %v2095, %v1999
          %v2104 = vmul.f32 %v1864, %v2096
          %v2105 = vmul.f32 %v1865, %v2097
          %v2106 = vmul.f32 %v1866, %v2098
          %v2107 = vmul.f32 %v1867, %v2099
          %v2108 = vmul.f32 %v1868, %v2100
          %v2109 = vmul.f32 %v1869, %v2101
          %v2110 = vmul.f32 %v1870, %v2102
          %v2111 = vmul.f32 %v1871, %v2103
          %v2112 = vmul.f32 %v1808, %v1768
          %v2113 = vmul.f32 %v1809, %v1769
          %v2114 = vmul.f32 %v1810, %v1770
          %v2115 = vmul.f32 %v1811, %v1771
          %v2116 = vmul.f32 %v1812, %v1772
          %v2117 = vmul.f32 %v1813, %v1773
          %v2118 = vmul.f32 %v1814, %v1774
          %v2119 = vmul.f32 %v1815, %v1775
          %vm2120 = vcmp.lt.f32.partialorder %v2112, 0.0
          %vm2121 = vcmp.lt.f32.partialorder %v2113, 0.0
          %vm2122 = vcmp.lt.f32.partialorder %v2114, 0.0
          %vm2123 = vcmp.lt.f32.partialorder %v2115, 0.0
          %vm2124 = vcmp.lt.f32.partialorder %v2116, 0.0
          %vm2125 = vcmp.lt.f32.partialorder %v2117, 0.0
          %vm2126 = vcmp.lt.f32.partialorder %v2118, 0.0
          %vm2127 = vcmp.lt.f32.partialorder %v2119, 0.0
          %v2128 = vmul.f32 %v1384, %v1760
          %v2129 = vmul.f32 %v1385, %v1761
          %v2130 = vmul.f32 %v1386, %v1762
          %v2131 = vmul.f32 %v1387, %v1763
          %v2132 = vmul.f32 %v1388, %v1764
          %v2133 = vmul.f32 %v1389, %v1765
          %v2134 = vmul.f32 %v1390, %v1766
          %v2135 = vmul.f32 %v1391, %v1767
          %vm2136 = vcmp.gt.f32.partialorder %v2128, 0.0
          %vm2137 = vcmp.gt.f32.partialorder %v2129, 0.0
          %vm2138 = vcmp.gt.f32.partialorder %v2130, 0.0
          %vm2139 = vcmp.gt.f32.partialorder %v2131, 0.0
          %vm2140 = vcmp.gt.f32.partialorder %v2132, 0.0
          %vm2141 = vcmp.gt.f32.partialorder %v2133, 0.0
          %vm2142 = vcmp.gt.f32.partialorder %v2134, 0.0
          %vm2143 = vcmp.gt.f32.partialorder %v2135, 0.0
          %v2144 = vsel %vm2136, 3.1415927, -3.1415927
          %v2145 = vsel %vm2137, 3.1415927, -3.1415927
          %v2146 = vsel %vm2138, 3.1415927, -3.1415927
          %v2147 = vsel %vm2139, 3.1415927, -3.1415927
          %v2148 = vsel %vm2140, 3.1415927, -3.1415927
          %v2149 = vsel %vm2141, 3.1415927, -3.1415927
          %v2150 = vsel %vm2142, 3.1415927, -3.1415927
          %v2151 = vsel %vm2143, 3.1415927, -3.1415927
          %v2152 = vsel %vm2120, %v2144, 0.0
          %v2153 = vsel %vm2121, %v2145, 0.0
          %v2154 = vsel %vm2122, %v2146, 0.0
          %v2155 = vsel %vm2123, %v2147, 0.0
          %v2156 = vsel %vm2124, %v2148, 0.0
          %v2157 = vsel %vm2125, %v2149, 0.0
          %v2158 = vsel %vm2126, %v2150, 0.0
          %v2159 = vsel %vm2127, %v2151, 0.0
          %v2160 = vadd.f32 %v2104, %v2152
          %v2161 = vadd.f32 %v2105, %v2153
          %v2162 = vadd.f32 %v2106, %v2154
          %v2163 = vadd.f32 %v2107, %v2155
          %v2164 = vadd.f32 %v2108, %v2156
          %v2165 = vadd.f32 %v2109, %v2157
          %v2166 = vadd.f32 %v2110, %v2158
          %v2167 = vadd.f32 %v2111, %v2159
          %v2168 = vmul.f32 %v2160, 0.40528473
          %v2169 = vmul.f32 %v2161, 0.40528473
          %v2170 = vmul.f32 %v2162, 0.40528473
          %v2171 = vmul.f32 %v2163, 0.40528473
          %v2172 = vmul.f32 %v2164, 0.40528473
          %v2173 = vmul.f32 %v2165, 0.40528473
          %v2174 = vmul.f32 %v2166, 0.40528473
          %v2175 = vmul.f32 %v2167, 0.40528473
          %v2176 = vmul.f32 %v2168, %v2160
          %v2177 = vmul.f32 %v2169, %v2161
          %v2178 = vmul.f32 %v2170, %v2162
          %v2179 = vmul.f32 %v2171, %v2163
          %v2180 = vmul.f32 %v2172, %v2164
          %v2181 = vmul.f32 %v2173, %v2165
          %v2182 = vmul.f32 %v2174, %v2166
          %v2183 = vmul.f32 %v2175, %v2167
          %v2184 = vadd.f32 %v1528, %v1744
          %v2185 = vadd.f32 %v1529, %v1745
          %v2186 = vadd.f32 %v1530, %v1746
          %v2187 = vadd.f32 %v1531, %v1747
          %v2188 = vadd.f32 %v1532, %v1748
          %v2189 = vadd.f32 %v1533, %v1749
          %v2190 = vadd.f32 %v1534, %v1750
          %v2191 = vadd.f32 %v1535, %v1751
          %v2192 = vmul.f32 %v2176, %v2176
          %v2193 = vmul.f32 %v2177, %v2177
          %v2194 = vmul.f32 %v2178, %v2178
          %v2195 = vmul.f32 %v2179, %v2179
          %v2196 = vmul.f32 %v2180, %v2180
          %v2197 = vmul.f32 %v2181, %v2181
          %v2198 = vmul.f32 %v2182, %v2182
          %v2199 = vmul.f32 %v2183, %v2183
          %v2200 = vmul.f32 %v2192, 0.5
          %v2201 = vmul.f32 %v2193, 0.5
          %v2202 = vmul.f32 %v2194, 0.5
          %v2203 = vmul.f32 %v2195, 0.5
          %v2204 = vmul.f32 %v2196, 0.5
          %v2205 = vmul.f32 %v2197, 0.5
          %v2206 = vmul.f32 %v2198, 0.5
          %v2207 = vmul.f32 %v2199, 0.5
          %v2208 = vadd.f32 %v1528, %v2176
          %v2209 = vadd.f32 %v1529, %v2177
          %v2210 = vadd.f32 %v1530, %v2178
          %v2211 = vadd.f32 %v1531, %v2179
          %v2212 = vadd.f32 %v1532, %v2180
          %v2213 = vadd.f32 %v1533, %v2181
          %v2214 = vadd.f32 %v1534, %v2182
          %v2215 = vadd.f32 %v1535, %v2183
          %v2216 = vrcp.pop %v2208
          %v2217 = vrcp.pop %v2209
          %v2218 = vrcp.pop %v2210
          %v2219 = vrcp.pop %v2211
          %v2220 = vrcp.pop %v2212
          %v2221 = vrcp.pop %v2213
          %v2222 = vrcp.pop %v2214
          %v2223 = vrcp.pop %v2215
          %v2224 = vmul.f32 %v2208, %v2216
          %v2225 = vmul.f32 %v2209, %v2217
          %v2226 = vmul.f32 %v2210, %v2218
          %v2227 = vmul.f32 %v2211, %v2219
          %v2228 = vmul.f32 %v2212, %v2220
          %v2229 = vmul.f32 %v2213, %v2221
          %v2230 = vmul.f32 %v2214, %v2222
          %v2231 = vmul.f32 %v2215, %v2223
          %v2232 = vsub.f32 2.0, %v2224
          %v2233 = vsub.f32 2.0, %v2225
          %v2234 = vsub.f32 2.0, %v2226
          %v2235 = vsub.f32 2.0, %v2227
          %v2236 = vsub.f32 2.0, %v2228
          %v2237 = vsub.f32 2.0, %v2229
          %v2238 = vsub.f32 2.0, %v2230
          %v2239 = vsub.f32 2.0, %v2231
          %v2240 = vmul.f32 %v2216, %v2232
          %v2241 = vmul.f32 %v2217, %v2233
          %v2242 = vmul.f32 %v2218, %v2234
          %v2243 = vmul.f32 %v2219, %v2235
          %v2244 = vmul.f32 %v2220, %v2236
          %v2245 = vmul.f32 %v2221, %v2237
          %v2246 = vmul.f32 %v2222, %v2238
          %v2247 = vmul.f32 %v2223, %v2239
          %v2248 = vmul.f32 %v2200, %v2240
          %v2249 = vmul.f32 %v2201, %v2241
          %v2250 = vmul.f32 %v2202, %v2242
          %v2251 = vmul.f32 %v2203, %v2243
          %v2252 = vmul.f32 %v2204, %v2244
          %v2253 = vmul.f32 %v2205, %v2245
          %v2254 = vmul.f32 %v2206, %v2246
          %v2255 = vmul.f32 %v2207, %v2247
          %v2256 = vadd.f32 %v2184, %v2248
          %v2257 = vadd.f32 %v2185, %v2249
          %v2258 = vadd.f32 %v2186, %v2250
          %v2259 = vadd.f32 %v2187, %v2251
          %v2260 = vadd.f32 %v2188, %v2252
          %v2261 = vadd.f32 %v2189, %v2253
          %v2262 = vadd.f32 %v2190, %v2254
          %v2263 = vadd.f32 %v2191, %v2255
          %v2264 = vlaneseq
          %v2265 = vshrl.u32 %v2264, 7
          %v2266 = vadd.s32 %v2265, 8
          %v2267 = vadd.s32 %v2265, 16
          %v2268 = vadd.s32 %v2265, 24
          %v2269 = vadd.s32 %v2265, 32
          %v2270 = vadd.s32 %v2265, 40
          %v2271 = vadd.s32 %v2265, 48
          %v2272 = vadd.s32 %v2265, 56
          %v2273 = vlaneseq
          %v2274 = vand.u32 %v2273, 127
          %v2275 = vstv 0
          %v2276 = vadd.s32 %v2275, %v2265
          %v2277 = vadd.s32 %v2275, %v2266
          %v2278 = vadd.s32 %v2275, %v2267
          %v2279 = vadd.s32 %v2275, %v2268
          %v2280 = vadd.s32 %v2275, %v2269
          %v2281 = vadd.s32 %v2275, %v2270
          %v2282 = vadd.s32 %v2275, %v2271
          %v2283 = vadd.s32 %v2275, %v2272
          %v2284 = vmul.u32 %v2276, 128
          %v2285 = vmul.u32 %v2277, 128
          %v2286 = vmul.u32 %v2278, 128
          %v2287 = vmul.u32 %v2279, 128
          %v2288 = vmul.u32 %v2280, 128
          %v2289 = vmul.u32 %v2281, 128
          %v2290 = vmul.u32 %v2282, 128
          %v2291 = vmul.u32 %v2283, 128
          %v2292 = vstv %s290
          %v2293 = vadd.s32 %v2292, %v2284
          %v2294 = vadd.s32 %v2292, %v2285
          %v2295 = vadd.s32 %v2292, %v2286
          %v2296 = vadd.s32 %v2292, %v2287
          %v2297 = vadd.s32 %v2292, %v2288
          %v2298 = vadd.s32 %v2292, %v2289
          %v2299 = vadd.s32 %v2292, %v2290
          %v2300 = vadd.s32 %v2292, %v2291
          %v2301 = vadd.s32 %v2293, %v2274
          %v2302 = vadd.s32 %v2294, %v2274
          %v2303 = vadd.s32 %v2295, %v2274
          %v2304 = vadd.s32 %v2296, %v2274
          %v2305 = vadd.s32 %v2297, %v2274
          %v2306 = vadd.s32 %v2298, %v2274
          %v2307 = vadd.s32 %v2299, %v2274
          %v2308 = vadd.s32 %v2300, %v2274
          %v2309 = vstv %s289
          %vm2310 = vcmp.lt.s32.totalorder %v2301, %v2309
          %vm2311 = vcmp.lt.s32.totalorder %v2302, %v2309
          %vm2312 = vcmp.lt.s32.totalorder %v2303, %v2309
          %vm2313 = vcmp.lt.s32.totalorder %v2304, %v2309
          %vm2314 = vcmp.lt.s32.totalorder %v2305, %v2309
          %vm2315 = vcmp.lt.s32.totalorder %v2306, %v2309
          %vm2316 = vcmp.lt.s32.totalorder %v2307, %v2309
          %vm2317 = vcmp.lt.s32.totalorder %v2308, %v2309
          %v2318 = vsel %vm2310, %v2256, 0.0
          %v2319 = vsel %vm2311, %v2257, 0.0
          %v2320 = vsel %vm2312, %v2258, 0.0
          %v2321 = vsel %vm2313, %v2259, 0.0
          %v2322 = vsel %vm2314, %v2260, 0.0
          %v2323 = vsel %vm2315, %v2261, 0.0
          %v2324 = vsel %vm2316, %v2262, 0.0
          %v2325 = vsel %vm2317, %v2263, 0.0
          %v2326 = vld [vmem:[%s271] sm:$0xff]
          %v2327 = vld [vmem:[%s271 + $0x8] sm:$0xff]
          %v2328 = vld [vmem:[%s271 + $0x10] sm:$0xff]
          %v2329 = vld [vmem:[%s271 + $0x18] sm:$0xff]
          %v2330 = vld [vmem:[%s271 + $0x20] sm:$0xff]
          %v2331 = vld [vmem:[%s271 + $0x28] sm:$0xff]
          %v2332 = vld [vmem:[%s271 + $0x30] sm:$0xff]
          %v2333 = vld [vmem:[%s271 + $0x38] sm:$0xff]
          %v2334 = vadd.f32 %v2326, %v2318
          %v2335 = vadd.f32 %v2327, %v2319
          %v2336 = vadd.f32 %v2328, %v2320
          %v2337 = vadd.f32 %v2329, %v2321
          %v2338 = vadd.f32 %v2330, %v2322
          %v2339 = vadd.f32 %v2331, %v2323
          %v2340 = vadd.f32 %v2332, %v2324
          %v2341 = vadd.f32 %v2333, %v2325
          %2342 = vst [vmem:[%s271] sm:$0xff] %v2334
          %2343 = vst [vmem:[%s271 + $0x8] sm:$0xff] %v2335
          %2344 = vst [vmem:[%s271 + $0x10] sm:$0xff] %v2336
          %2345 = vst [vmem:[%s271 + $0x18] sm:$0xff] %v2337
          %2346 = vst [vmem:[%s271 + $0x20] sm:$0xff] %v2338
          %2347 = vst [vmem:[%s271 + $0x28] sm:$0xff] %v2339
          %2348 = vst [vmem:[%s271 + $0x30] sm:$0xff] %v2340
          %2349 = vst [vmem:[%s271 + $0x38] sm:$0xff] %v2341
        $region48: #{tpu_custom_call.1} parent=27 // pred_fallthru
          _
        %s2350 = sand.u32 %s100, 1
        %s2351 = scalar_lea.sflag [#allocation6], %s2350
        %s2352 = sand.u32 %s100, 1
        %s2353 = smul.addr %s2352, 64
        %s2354 = scalar_lea.vmem [#allocation9], %s2353
        // Predicated region
        $region49: #{tpu_custom_call.1} parent=27 // pred_check
          %p2355 = pneg %p110
        $region50: #{tpu_custom_call.1} parent=27 // pred_check_branch
          %2357 = sbr.rel (%p2355) target = $region52
        $region51: #{tpu_custom_call.1} parent=27 // pred_region
          %s2359 = ssub.s32 1024, 1024
          %2360 = vsyncadd %s2351, %s2359
          %s2361 = smul.addr %s28, 8
          %s2362 = smul.addr %s2361, 128
          %s2363 = scalar_lea.hbm %s3, %s2362
          %s2364 = sshll.u32 %s2354, 4
          %s2365 = int_to_ptr.vmem [resolvable:$true] %s2364
          %2370 = dma.vmem_to_hbm [thread:$0]  %s2365, 1024, %s2363, %s2351, 128, 128, 8
        $region52: #{tpu_custom_call.1} parent=27 // pred_fallthru
          _
      $region28: #{tpu_custom_call.1} parent=5 // pred_fallthru
        _
      %p2371 = scmp.le.s32.totalorder 2, %s19
      // Predicated region
      $region53: #{tpu_custom_call.1} parent=5 // pred_check
        %p2372 = pneg %p2371
      $region54: #{tpu_custom_call.1} parent=5 // pred_check_branch
        %2374 = sbr.rel (%p2372) target = $region56
      $region55: #{tpu_custom_call.1} parent=5 // pred_region
        %s2375 = ssub.s32 %s19, 2
        // Predicated region
        $region57: #{tpu_custom_call.1} parent=55 // pred_check
          %p2376 = pneg %p116
        $region58: #{tpu_custom_call.1} parent=55 // pred_check_branch
          %2378 = sbr.rel (%p2376) target = $region60
        $region59: #{tpu_custom_call.1} parent=55 // pred_region
          %s2379 = sand.u32 %s101, 1
          %s2380 = scalar_lea.sflag [#allocation6], %s2379
          %s2381 = sand.u32 %s101, 1
          %s2382 = smul.addr %s2381, 64
          %s2383 = scalar_lea.vmem [#allocation9], %s2382
          %2384 = dma.done %s2380, 1024
        $region60: #{tpu_custom_call.1} parent=55 // pred_fallthru
          _
      $region56: #{tpu_custom_call.1} parent=5 // pred_fallthru
        _
    $region6: #{tpu_custom_call.1} parent=1 // loop_footer
      %s23 = sadd.s32 1, %s19
    $region7: #{tpu_custom_call.1} parent=1 // loop_footer_branch
      %18 = sbr.rel target = $region3
    $region8: #{tpu_custom_call.1} parent=1 // loop_exit
      _
    %2385 = vsyncpa [#allocation5], 1
    %s2386 = scalar_lea.sflag [#allocation5], 1
    %2387 = vsyncpa %s2386, 1
    %2388 = vsyncpa [#allocation8], 1
    %s2389 = scalar_lea.sflag [#allocation8], 1
    %2390 = vsyncpa %s2389, 1
    %2391 = vsyncpa [#allocation6], 1
    %s2392 = scalar_lea.sflag [#allocation6], 1
    %2393 = vsyncpa %s2392, 1

</llo_original>
